<compile_context>
chip_gen: v5e
topology: v5e:2x2
jax: 0.10.0
libtpu: 0.0.40
codegen_flags: <defaults>
</compile_context>

<pallas_src>
import math
import functools

import jax
import jax.numpy as jnp
from jax import lax
from jax.experimental import pallas as pl
from jax.experimental.pallas import tpu as pltpu


def _pick_heads_per_group(num_heads: int, head_dim: int) -> int:
    """Pick a head-group size so each group's Q/K/V slab is lane-aligned."""
    hidden = num_heads * head_dim
    if hidden <= 128:
        return num_heads                      # whole hidden dim fits one slab
    if head_dim % 128 == 0:
        return 1                              # each head already lane-aligned
    if 128 % head_dim == 0:
        g = 128 // head_dim                   # e.g. d=64 -> head pairs
        if num_heads % g == 0:
            return g
    return num_heads                          # fallback: one group of all heads


def _vmem_limit_bytes(S, H, head_dim, G, num_groups):
    """Conservative per-step VMEM estimate (review: size vmem_limit_bytes)."""
    bf16, f32, lane, sub = 2, 4, 128, 8
    gd = G * head_dim
    pS = max(S, sub)
    pgd = max(gd, lane)
    pH = max(H, lane)
    p3H = max(3 * H, lane)
    est = 0
    est += 2 * pS * pH * bf16                    # x block, double-buffered
    est += 2 * sub * max(S, lane) * f32          # mask block
    est += 2 * max(H, sub) * p3H * bf16          # fused W (worst case 2 buffers)
    est += 2 * sub * p3H * f32                   # fused bias
    est += 2 * pS * pH * f32                     # output block, double-buffered
    est += 3 * num_groups * pS * pgd * bf16      # Q/K/V group-major scratch
    est += num_groups * pS * pgd * f32           # per-group context scratch
    est += pS * p3H * (f32 + bf16)               # live fused-projection temporaries
    est += G * (2 * pS * pS * f32 + pS * pS * bf16)  # per-group scores/exp temps
    est = int(est * 1.5) + (1 << 20)             # headroom for spills/bookkeeping
    # Cap at v7x physical VMEM; larger S belongs to the flash-tiling TODO.
    return max(32 << 20, min(est, 64 << 20))


def _bert_self_attn_kernel(x_ref, mask_ref, w_ref, b_ref, o_ref,
                           q_ref, k_ref, v_ref, ctx_ref, *,
                           num_groups: int, heads_per_group: int,
                           head_dim: int, hidden: int):
    # x_ref:    (1, S, H)        bf16  current batch element
    # mask_ref: (1, 1, S)        f32   additive mask (broadcast over queries)
    # w_ref:    (H, 3H)          bf16  fused [Q|K|V] weight, VMEM-resident
    # b_ref:    (1, 3H)          f32   fused bias, VMEM-resident
    # o_ref:    (1, S, H)        f32   output block
    # q/k/v_ref:(num_groups,S,gd) bf16 head-group-major projection scratch
    # ctx_ref:  (num_groups,S,gd) f32  per-group context scratch
    gd = heads_per_group * head_dim

    # ---- Fused QKV projection: ONE wide MXU matmul, f32 accumulate ----------
    # 1/sqrt(head_dim) is already folded into the Q columns of w_ref / b_ref.
    x = x_ref[0]                                                  # (S, H) bf16
    proj = jnp.dot(x, w_ref[...], preferred_element_type=jnp.float32) + b_ref[...]
    proj = proj.astype(jnp.bfloat16)                              # (S, 3H)

    # Repack head-group-major (static, lane-aligned slices when gd == 128) so
    # the group loop below only uses well-supported leading-dim dynamic refs.
    for g_fill in range(num_groups):
        base = g_fill * gd
        q_ref[g_fill] = proj[:, base:base + gd]
        k_ref[g_fill] = proj[:, hidden + base:hidden + base + gd]
        v_ref[g_fill] = proj[:, 2 * hidden + base:2 * hidden + base + gd]

    mask = mask_ref[0]                                            # (1, S) f32

    def group_body(g, carry):
        q_slab = q_ref[g]                                         # (S, gd) bf16
        k_slab = k_ref[g]
        v_slab = v_ref[g]
        ctx_parts = []
        for h in range(heads_per_group):                          # tiny static loop
            sl = slice(h * head_dim, (h + 1) * head_dim)
            qh, kh, vh = q_slab[:, sl], k_slab[:, sl], v_slab[:, sl]
            # scores = q @ k^T, contracting last dims (no explicit transpose).
            scores = lax.dot_general(qh, kh, (((1,), (1,)), ((), ())),
                                     preferred_element_type=jnp.float32)   # (S, S)
            scores = scores + mask
            # Numerically stable softmax in f32; normalize AFTER P@V.
            m = jnp.max(scores, axis=-1, keepdims=True)
            e = jnp.exp(scores - m)                               # (S, S) f32
            denom = jnp.sum(e, axis=-1, keepdims=True)            # (S, 1) f32
            ctx = jnp.dot(e.astype(jnp.bfloat16), vh,
                          preferred_element_type=jnp.float32)     # (S, d) f32
            ctx_parts.append(ctx * pl.reciprocal(denom, approx=True))
        group_ctx = (ctx_parts[0] if len(ctx_parts) == 1
                     else jnp.concatenate(ctx_parts, axis=-1))    # (S, gd) f32
        ctx_ref[g] = group_ctx
        return carry

    if num_groups == 1:
        group_body(0, 0)                        # static path (toy / small hidden)
    else:
        # fori_loop (not a static Python loop) bounds the live range of the
        # per-group (S, S) temporaries -> VMEM use independent of num_heads.
        lax.fori_loop(0, num_groups, group_body, 0)

    # ---- Lane-dense writeback of the whole (S, H) output block --------------
    # Static, 128-lane-aligned column slabs whenever num_groups > 1.
    for g_out in range(num_groups):
        o_ref[0, :, g_out * gd:(g_out + 1) * gd] = ctx_ref[g_out].astype(o_ref.dtype)


def bert_self_attention(hidden_states, attention_mask, params, num_heads: int):
    """hidden_states: (B, S, H) f32; attention_mask: (B, 1, 1, S) f32 additive.

    params use the x @ W + b convention with W of shape (H, H).
    """
    B, S, H = hidden_states.shape
    assert H % num_heads == 0
    head_dim = H // num_heads

    G = _pick_heads_per_group(num_heads, head_dim)
    num_groups = num_heads // G
    gd = G * head_dim

    # ---- Host-side packing: fused [Q | K | V] weight / bias ------------------
    # 1/sqrt(d) folded into the Q block here (free: fuses into the bf16 cast).
    inv_sqrt_d = 1.0 / math.sqrt(head_dim)
    w_full = jnp.concatenate(
        [params["wq"] * inv_sqrt_d, params["wk"], params["wv"]],
        axis=-1).astype(jnp.bfloat16)                            # (H, 3H)
    b_full = jnp.concatenate(
        [params["bq"] * inv_sqrt_d, params["bk"], params["bv"]],
        axis=-1).astype(jnp.float32).reshape(1, 3 * H)           # (1, 3H)

    x_bf16 = hidden_states.astype(jnp.bfloat16)
    mask3 = attention_mask.reshape(B, 1, S).astype(jnp.float32)

    kernel = functools.partial(_bert_self_attn_kernel,
                               num_groups=num_groups, heads_per_group=G,
                               head_dim=head_dim, hidden=H)

    vmem_limit = _vmem_limit_bytes(S, H, head_dim, G, num_groups)

    def call(single_buffer_weights: bool):
        # Constant block index -> the fused W / b are DMA'd once and stay
        # resident in VMEM across all batch steps.  Buffered(1) additionally
        # avoids allocating a second (never refetched) buffer.
        w_kwargs = ({"pipeline_mode": pl.Buffered(1)}
                    if single_buffer_weights else {})
        grid_spec = pltpu.PrefetchScalarGridSpec(
            num_scalar_prefetch=0,
            grid=(B,),
            in_specs=[
                pl.BlockSpec((1, S, H), lambda b: (b, 0, 0)),            # x (bf16)
                pl.BlockSpec((1, 1, S), lambda b: (b, 0, 0)),            # mask (f32)
                pl.BlockSpec((H, 3 * H), lambda b: (0, 0), **w_kwargs),  # fused W
                pl.BlockSpec((1, 3 * H), lambda b: (0, 0), **w_kwargs),  # fused b
            ],
            out_specs=pl.BlockSpec((1, S, H), lambda b: (b, 0, 0)),
            scratch_shapes=[
                pltpu.VMEM((num_groups, S, gd), jnp.bfloat16),   # Q (group-major)
                pltpu.VMEM((num_groups, S, gd), jnp.bfloat16),   # K
                pltpu.VMEM((num_groups, S, gd), jnp.bfloat16),   # V
                pltpu.VMEM((num_groups, S, gd), jnp.float32),    # per-group context
            ],
        )
        out = pl.pallas_call(
            kernel,
            # NOTE: output could be emitted bf16 if the downstream projection
            # consumes bf16 (halves the HBM writeback); kept at the input dtype
            # to preserve the module's interface.
            out_shape=jax.ShapeDtypeStruct((B, S, H), hidden_states.dtype),
            grid_spec=grid_spec,
            compiler_params=pltpu.CompilerParams(
                dimension_semantics=("parallel",),
                vmem_limit_bytes=vmem_limit),
        )(x_bf16, mask3, w_full, b_full)
        return out

    try:
        return jax.block_until_ready(call(True))
    except Exception:
        # Fallback for jax builds that reject single-buffer pipeline_mode: the
        # weights merely get a (never-refetched) second VMEM buffer.
        return call(False)


def _reference(hidden_states, attention_mask, params, num_heads):
    """Pure-JAX f32 reference mirroring the PyTorch forward (dropout in eval)."""
    B, S, H = hidden_states.shape
    d = H // num_heads

    def proj(w, b):
        return hidden_states @ w + b                        # (B, S, H)

    def split(x):
        return x.reshape(B, S, num_heads, d).transpose(0, 2, 1, 3)   # (B, nH, S, d)

    q = split(proj(params["wq"], params["bq"]))
    k = split(proj(params["wk"], params["bk"]))
    v = split(proj(params["wv"], params["bv"]))

    scores = jnp.einsum("bhqd,bhkd->bhqk", q, k) / math.sqrt(d)
    scores = scores + attention_mask                        # (B,1,1,S) broadcast
    probs = jax.nn.softmax(scores, axis=-1)
    ctx = jnp.einsum("bhqk,bhkd->bhqd", probs, v)
    return ctx.transpose(0, 2, 1, 3).reshape(B, S, H)


def _run_case(key, B, S, H, num_heads):
    k_x, k_m, kq, kk, kv, kbq, kbk, kbv = jax.random.split(key, 8)

    hidden_states = jax.random.normal(k_x, (B, S, H), dtype=jnp.float32)

    # Standard BERT additive mask: 0 for visible tokens, -10000 for masked.
    keep = (jax.random.uniform(k_m, (B, 1, 1, S)) > 0.2).astype(jnp.float32)
    attention_mask = (1.0 - keep) * -10000.0

    # Deterministic parameter init (nn.Linear-style uniform bound).
    bound = 1.0 / math.sqrt(H)
    params = {
        "wq": jax.random.uniform(kq, (H, H), jnp.float32, -bound, bound),
        "wk": jax.random.uniform(kk, (H, H), jnp.float32, -bound, bound),
        "wv": jax.random.uniform(kv, (H, H), jnp.float32, -bound, bound),
        "bq": jax.random.uniform(kbq, (H,), jnp.float32, -bound, bound),
        "bk": jax.random.uniform(kbk, (H,), jnp.float32, -bound, bound),
        "bv": jax.random.uniform(kbv, (H,), jnp.float32, -bound, bound),
    }

    out = bert_self_attention(hidden_states, attention_mask, params, num_heads)
    out = jax.block_until_ready(out)

    ref = _reference(hidden_states, attention_mask, params, num_heads)
    assert out.shape == (B, S, H)
    # Matmuls run bf16-in / f32-acc on the MXU; compare with bf16 tolerance.
    max_err = float(jnp.max(jnp.abs(out - ref)))
    assert jnp.allclose(out, ref, atol=5e-2, rtol=5e-2), \
        f"mismatch vs reference (shape={(B, S, H)}, max_err={max_err})"
    return max_err


if __name__ == "__main__":
    root = jax.random.PRNGKey(0)
    k1, k2 = jax.random.split(root)

    # Case 1: toy module shape (single head group; static in-kernel path).
    _run_case(k1, B=2, S=8, H=32, num_heads=4)
    # Case 2: multi-group shape (exercises the fori_loop group path with
    # lane-aligned 128-wide group slabs, like BERT-base's head pairs).
    _run_case(k2, B=2, S=16, H=256, num_heads=4)

    print("KERNEL_OK")
</pallas_src>

<mosaic_0001>
module attributes {stable_mosaic.version = 11 : i64} {
  func.func @_bert_self_attn_kernel(%arg0: i32, %arg1: memref<1x8x32xbf16, #tpu.memory_space<vmem>>, %arg2: memref<1x1x8xf32, #tpu.memory_space<vmem>>, %arg3: memref<32x96xbf16, #tpu.memory_space<vmem>>, %arg4: memref<1x96xf32, #tpu.memory_space<vmem>>, %arg5: memref<1x8x32xf32, #tpu.memory_space<vmem>>, %arg6: memref<1x8x32xbf16, #tpu.memory_space<vmem>>, %arg7: memref<1x8x32xbf16, #tpu.memory_space<vmem>>, %arg8: memref<1x8x32xbf16, #tpu.memory_space<vmem>>, %arg9: memref<1x8x32xf32, #tpu.memory_space<vmem>>) attributes {dimension_semantics = [#tpu.dimension_semantics<parallel>], iteration_bounds = array<i64: 2>, scalar_prefetch = 0 : i64, scratch_operands = 4 : i64, tpu.core_type = #tpu.core_type<tc>, window_params = [{transform_indices = @transform_0, window_bounds = array<i64: 1, 8, 32>}, {transform_indices = @transform_1, window_bounds = array<i64: 1, 1, 8>}, {pipeline_mode = #tpu.pipeline_mode<synchronous>, transform_indices = @transform_2, window_bounds = array<i64: 32, 96>}, {pipeline_mode = #tpu.pipeline_mode<synchronous>, transform_indices = @transform_3, window_bounds = array<i64: 1, 96>}, {transform_indices = @transform_4, window_bounds = array<i64: 1, 8, 32>}]} {
    %c0 = arith.constant 0 : index
    %c0_0 = arith.constant 0 : index
    %c0_1 = arith.constant 0 : index
    %0 = vector.load %arg1[%c0, %c0_0, %c0_1] : memref<1x8x32xbf16, #tpu.memory_space<vmem>>, vector<1x8x32xbf16>
    %1 = vector.shape_cast %0 : vector<1x8x32xbf16> to vector<8x32xbf16>
    %c0_2 = arith.constant 0 : index
    %c0_3 = arith.constant 0 : index
    %2 = vector.load %arg3[%c0_2, %c0_3] : memref<32x96xbf16, #tpu.memory_space<vmem>>, vector<32x96xbf16>
    %cst = arith.constant dense<0.000000e+00> : vector<8x96xf32>
    %3 = tpu.matmul %1, %2, %cst {dimension_numbers = #tpu.dot_dimension_numbers<[1], [0], [0], [1], [0, 0, 1, 1], [], []>} : vector<8x32xbf16>, vector<32x96xbf16>, vector<8x96xf32> -> vector<8x96xf32>
    %c0_4 = arith.constant 0 : index
    %c0_5 = arith.constant 0 : index
    %4 = vector.load %arg4[%c0_4, %c0_5] : memref<1x96xf32, #tpu.memory_space<vmem>>, vector<1x96xf32>
    %5 = vector.broadcast %4 : vector<1x96xf32> to vector<8x96xf32>
    %6 = arith.addf %3, %5 : vector<8x96xf32>
    %7 = arith.truncf %6 : vector<8x96xf32> to vector<8x96xbf16>
    %8 = vector.extract_strided_slice %7 {offsets = [0, 0], sizes = [8, 32], strides = [1, 1]} : vector<8x96xbf16> to vector<8x32xbf16>
    %c0_6 = arith.constant 0 : index
    %c0_7 = arith.constant 0 : index
    %c0_8 = arith.constant 0 : index
    %9 = vector.load %arg6[%c0_6, %c0_7, %c0_8] : memref<1x8x32xbf16, #tpu.memory_space<vmem>>, vector<1x8x32xbf16>
    %10 = vector.shape_cast %9 : vector<1x8x32xbf16> to vector<8x32xbf16>
    %11 = vector.shape_cast %8 : vector<8x32xbf16> to vector<1x8x32xbf16>
    tpu.vector_store %arg6[%c0_6, %c0_7, %c0_8], %11 {strides = array<i32>} : memref<1x8x32xbf16, #tpu.memory_space<vmem>>, vector<1x8x32xbf16>,
    %12 = vector.extract_strided_slice %7 {offsets = [0, 32], sizes = [8, 32], strides = [1, 1]} : vector<8x96xbf16> to vector<8x32xbf16>
    %c0_9 = arith.constant 0 : index
    %c0_10 = arith.constant 0 : index
    %c0_11 = arith.constant 0 : index
    %13 = vector.load %arg7[%c0_9, %c0_10, %c0_11] : memref<1x8x32xbf16, #tpu.memory_space<vmem>>, vector<1x8x32xbf16>
    %14 = vector.shape_cast %13 : vector<1x8x32xbf16> to vector<8x32xbf16>
    %15 = vector.shape_cast %12 : vector<8x32xbf16> to vector<1x8x32xbf16>
    tpu.vector_store %arg7[%c0_9, %c0_10, %c0_11], %15 {strides = array<i32>} : memref<1x8x32xbf16, #tpu.memory_space<vmem>>, vector<1x8x32xbf16>,
    %16 = vector.extract_strided_slice %7 {offsets = [0, 64], sizes = [8, 32], strides = [1, 1]} : vector<8x96xbf16> to vector<8x32xbf16>
    %c0_12 = arith.constant 0 : index
    %c0_13 = arith.constant 0 : index
    %c0_14 = arith.constant 0 : index
    %17 = vector.load %arg8[%c0_12, %c0_13, %c0_14] : memref<1x8x32xbf16, #tpu.memory_space<vmem>>, vector<1x8x32xbf16>
    %18 = vector.shape_cast %17 : vector<1x8x32xbf16> to vector<8x32xbf16>
    %19 = vector.shape_cast %16 : vector<8x32xbf16> to vector<1x8x32xbf16>
    tpu.vector_store %arg8[%c0_12, %c0_13, %c0_14], %19 {strides = array<i32>} : memref<1x8x32xbf16, #tpu.memory_space<vmem>>, vector<1x8x32xbf16>,
    %c0_15 = arith.constant 0 : index
    %c0_16 = arith.constant 0 : index
    %c0_17 = arith.constant 0 : index
    %20 = vector.load %arg2[%c0_15, %c0_16, %c0_17] : memref<1x1x8xf32, #tpu.memory_space<vmem>>, vector<1x1x8xf32>
    %21 = vector.shape_cast %20 : vector<1x1x8xf32> to vector<1x8xf32>
    %c0_18 = arith.constant 0 : index
    %c0_19 = arith.constant 0 : index
    %c0_20 = arith.constant 0 : index
    %22 = vector.load %arg6[%c0_18, %c0_19, %c0_20] : memref<1x8x32xbf16, #tpu.memory_space<vmem>>, vector<1x8x32xbf16>
    %23 = vector.shape_cast %22 : vector<1x8x32xbf16> to vector<8x32xbf16>
    %c0_21 = arith.constant 0 : index
    %c0_22 = arith.constant 0 : index
    %c0_23 = arith.constant 0 : index
    %24 = vector.load %arg7[%c0_21, %c0_22, %c0_23] : memref<1x8x32xbf16, #tpu.memory_space<vmem>>, vector<1x8x32xbf16>
    %25 = vector.shape_cast %24 : vector<1x8x32xbf16> to vector<8x32xbf16>
    %c0_24 = arith.constant 0 : index
    %c0_25 = arith.constant 0 : index
    %c0_26 = arith.constant 0 : index
    %26 = vector.load %arg8[%c0_24, %c0_25, %c0_26] : memref<1x8x32xbf16, #tpu.memory_space<vmem>>, vector<1x8x32xbf16>
    %27 = vector.shape_cast %26 : vector<1x8x32xbf16> to vector<8x32xbf16>
    %28 = vector.extract_strided_slice %23 {offsets = [0, 0], sizes = [8, 8], strides = [1, 1]} : vector<8x32xbf16> to vector<8x8xbf16>
    %29 = vector.extract_strided_slice %25 {offsets = [0, 0], sizes = [8, 8], strides = [1, 1]} : vector<8x32xbf16> to vector<8x8xbf16>
    %30 = vector.extract_strided_slice %27 {offsets = [0, 0], sizes = [8, 8], strides = [1, 1]} : vector<8x32xbf16> to vector<8x8xbf16>
    %cst_27 = arith.constant dense<0.000000e+00> : vector<8x8xf32>
    %31 = tpu.matmul %28, %29, %cst_27 {dimension_numbers = #tpu.dot_dimension_numbers<[1], [1], [0], [0], [0, 0, 1, 0], [], []>} : vector<8x8xbf16>, vector<8x8xbf16>, vector<8x8xf32> -> vector<8x8xf32>
    %32 = vector.broadcast %21 : vector<1x8xf32> to vector<8x8xf32>
    %33 = arith.addf %31, %32 : vector<8x8xf32>
    %cst_28 = arith.constant dense<0xFF800000> : vector<8xf32>
    %34 = vector.multi_reduction <maximumf>, %33, %cst_28 [1] : vector<8x8xf32> to vector<8xf32>
    %35 = vector.shape_cast %34 : vector<8xf32> to vector<8x1xf32>
    %36 = vector.broadcast %35 : vector<8x1xf32> to vector<8x8xf32>
    %37 = arith.subf %33, %36 : vector<8x8xf32>
    %38 = math.exp %37 : vector<8x8xf32>
    %cst_29 = arith.constant dense<0.000000e+00> : vector<8xf32>
    %39 = vector.multi_reduction <add>, %38, %cst_29 [1] : vector<8x8xf32> to vector<8xf32>
    %40 = vector.shape_cast %39 : vector<8xf32> to vector<8x1xf32>
    %41 = arith.truncf %38 : vector<8x8xf32> to vector<8x8xbf16>
    %cst_30 = arith.constant dense<0.000000e+00> : vector<8x8xf32>
    %42 = tpu.matmul %41, %30, %cst_30 {dimension_numbers = #tpu.dot_dimension_numbers<[1], [0], [0], [1], [0, 0, 1, 1], [], []>} : vector<8x8xbf16>, vector<8x8xbf16>, vector<8x8xf32> -> vector<8x8xf32>
    %43 = tpu.reciprocal %40 {approx = true} : vector<8x1xf32> -> vector<8x1xf32>
    %44 = vector.broadcast %43 : vector<8x1xf32> to vector<8x8xf32>
    %45 = arith.mulf %42, %44 : vector<8x8xf32>
    %46 = vector.extract_strided_slice %23 {offsets = [0, 8], sizes = [8, 8], strides = [1, 1]} : vector<8x32xbf16> to vector<8x8xbf16>
    %47 = vector.extract_strided_slice %25 {offsets = [0, 8], sizes = [8, 8], strides = [1, 1]} : vector<8x32xbf16> to vector<8x8xbf16>
    %48 = vector.extract_strided_slice %27 {offsets = [0, 8], sizes = [8, 8], strides = [1, 1]} : vector<8x32xbf16> to vector<8x8xbf16>
    %cst_31 = arith.constant dense<0.000000e+00> : vector<8x8xf32>
    %49 = tpu.matmul %46, %47, %cst_31 {dimension_numbers = #tpu.dot_dimension_numbers<[1], [1], [0], [0], [0, 0, 1, 0], [], []>} : vector<8x8xbf16>, vector<8x8xbf16>, vector<8x8xf32> -> vector<8x8xf32>
    %50 = vector.broadcast %21 : vector<1x8xf32> to vector<8x8xf32>
    %51 = arith.addf %49, %50 : vector<8x8xf32>
    %cst_32 = arith.constant dense<0xFF800000> : vector<8xf32>
    %52 = vector.multi_reduction <maximumf>, %51, %cst_32 [1] : vector<8x8xf32> to vector<8xf32>
    %53 = vector.shape_cast %52 : vector<8xf32> to vector<8x1xf32>
    %54 = vector.broadcast %53 : vector<8x1xf32> to vector<8x8xf32>
    %55 = arith.subf %51, %54 : vector<8x8xf32>
    %56 = math.exp %55 : vector<8x8xf32>
    %cst_33 = arith.constant dense<0.000000e+00> : vector<8xf32>
    %57 = vector.multi_reduction <add>, %56, %cst_33 [1] : vector<8x8xf32> to vector<8xf32>
    %58 = vector.shape_cast %57 : vector<8xf32> to vector<8x1xf32>
    %59 = arith.truncf %56 : vector<8x8xf32> to vector<8x8xbf16>
    %cst_34 = arith.constant dense<0.000000e+00> : vector<8x8xf32>
    %60 = tpu.matmul %59, %48, %cst_34 {dimension_numbers = #tpu.dot_dimension_numbers<[1], [0], [0], [1], [0, 0, 1, 1], [], []>} : vector<8x8xbf16>, vector<8x8xbf16>, vector<8x8xf32> -> vector<8x8xf32>
    %61 = tpu.reciprocal %58 {approx = true} : vector<8x1xf32> -> vector<8x1xf32>
    %62 = vector.broadcast %61 : vector<8x1xf32> to vector<8x8xf32>
    %63 = arith.mulf %60, %62 : vector<8x8xf32>
    %64 = vector.extract_strided_slice %23 {offsets = [0, 16], sizes = [8, 8], strides = [1, 1]} : vector<8x32xbf16> to vector<8x8xbf16>
    %65 = vector.extract_strided_slice %25 {offsets = [0, 16], sizes = [8, 8], strides = [1, 1]} : vector<8x32xbf16> to vector<8x8xbf16>
    %66 = vector.extract_strided_slice %27 {offsets = [0, 16], sizes = [8, 8], strides = [1, 1]} : vector<8x32xbf16> to vector<8x8xbf16>
    %cst_35 = arith.constant dense<0.000000e+00> : vector<8x8xf32>
    %67 = tpu.matmul %64, %65, %cst_35 {dimension_numbers = #tpu.dot_dimension_numbers<[1], [1], [0], [0], [0, 0, 1, 0], [], []>} : vector<8x8xbf16>, vector<8x8xbf16>, vector<8x8xf32> -> vector<8x8xf32>
    %68 = vector.broadcast %21 : vector<1x8xf32> to vector<8x8xf32>
    %69 = arith.addf %67, %68 : vector<8x8xf32>
    %cst_36 = arith.constant dense<0xFF800000> : vector<8xf32>
    %70 = vector.multi_reduction <maximumf>, %69, %cst_36 [1] : vector<8x8xf32> to vector<8xf32>
    %71 = vector.shape_cast %70 : vector<8xf32> to vector<8x1xf32>
    %72 = vector.broadcast %71 : vector<8x1xf32> to vector<8x8xf32>
    %73 = arith.subf %69, %72 : vector<8x8xf32>
    %74 = math.exp %73 : vector<8x8xf32>
    %cst_37 = arith.constant dense<0.000000e+00> : vector<8xf32>
    %75 = vector.multi_reduction <add>, %74, %cst_37 [1] : vector<8x8xf32> to vector<8xf32>
    %76 = vector.shape_cast %75 : vector<8xf32> to vector<8x1xf32>
    %77 = arith.truncf %74 : vector<8x8xf32> to vector<8x8xbf16>
    %cst_38 = arith.constant dense<0.000000e+00> : vector<8x8xf32>
    %78 = tpu.matmul %77, %66, %cst_38 {dimension_numbers = #tpu.dot_dimension_numbers<[1], [0], [0], [1], [0, 0, 1, 1], [], []>} : vector<8x8xbf16>, vector<8x8xbf16>, vector<8x8xf32> -> vector<8x8xf32>
    %79 = tpu.reciprocal %76 {approx = true} : vector<8x1xf32> -> vector<8x1xf32>
    %80 = vector.broadcast %79 : vector<8x1xf32> to vector<8x8xf32>
    %81 = arith.mulf %78, %80 : vector<8x8xf32>
    %82 = vector.extract_strided_slice %23 {offsets = [0, 24], sizes = [8, 8], strides = [1, 1]} : vector<8x32xbf16> to vector<8x8xbf16>
    %83 = vector.extract_strided_slice %25 {offsets = [0, 24], sizes = [8, 8], strides = [1, 1]} : vector<8x32xbf16> to vector<8x8xbf16>
    %84 = vector.extract_strided_slice %27 {offsets = [0, 24], sizes = [8, 8], strides = [1, 1]} : vector<8x32xbf16> to vector<8x8xbf16>
    %cst_39 = arith.constant dense<0.000000e+00> : vector<8x8xf32>
    %85 = tpu.matmul %82, %83, %cst_39 {dimension_numbers = #tpu.dot_dimension_numbers<[1], [1], [0], [0], [0, 0, 1, 0], [], []>} : vector<8x8xbf16>, vector<8x8xbf16>, vector<8x8xf32> -> vector<8x8xf32>
    %86 = vector.broadcast %21 : vector<1x8xf32> to vector<8x8xf32>
    %87 = arith.addf %85, %86 : vector<8x8xf32>
    %cst_40 = arith.constant dense<0xFF800000> : vector<8xf32>
    %88 = vector.multi_reduction <maximumf>, %87, %cst_40 [1] : vector<8x8xf32> to vector<8xf32>
    %89 = vector.shape_cast %88 : vector<8xf32> to vector<8x1xf32>
    %90 = vector.broadcast %89 : vector<8x1xf32> to vector<8x8xf32>
    %91 = arith.subf %87, %90 : vector<8x8xf32>
    %92 = math.exp %91 : vector<8x8xf32>
    %cst_41 = arith.constant dense<0.000000e+00> : vector<8xf32>
    %93 = vector.multi_reduction <add>, %92, %cst_41 [1] : vector<8x8xf32> to vector<8xf32>
    %94 = vector.shape_cast %93 : vector<8xf32> to vector<8x1xf32>
    %95 = arith.truncf %92 : vector<8x8xf32> to vector<8x8xbf16>
    %cst_42 = arith.constant dense<0.000000e+00> : vector<8x8xf32>
    %96 = tpu.matmul %95, %84, %cst_42 {dimension_numbers = #tpu.dot_dimension_numbers<[1], [0], [0], [1], [0, 0, 1, 1], [], []>} : vector<8x8xbf16>, vector<8x8xbf16>, vector<8x8xf32> -> vector<8x8xf32>
    %97 = tpu.reciprocal %94 {approx = true} : vector<8x1xf32> -> vector<8x1xf32>
    %98 = vector.broadcast %97 : vector<8x1xf32> to vector<8x8xf32>
    %99 = arith.mulf %96, %98 : vector<8x8xf32>
    %100 = tpu.concatenate %45, %63, %81, %99 in 1 : vector<8x8xf32>, vector<8x8xf32>, vector<8x8xf32>, vector<8x8xf32> -> vector<8x32xf32>
    %c0_43 = arith.constant 0 : index
    %c0_44 = arith.constant 0 : index
    %c0_45 = arith.constant 0 : index
    %101 = vector.load %arg9[%c0_43, %c0_44, %c0_45] : memref<1x8x32xf32, #tpu.memory_space<vmem>>, vector<1x8x32xf32>
    %102 = vector.shape_cast %101 : vector<1x8x32xf32> to vector<8x32xf32>
    %103 = vector.shape_cast %100 : vector<8x32xf32> to vector<1x8x32xf32>
    tpu.vector_store %arg9[%c0_43, %c0_44, %c0_45], %103 {strides = array<i32>} : memref<1x8x32xf32, #tpu.memory_space<vmem>>, vector<1x8x32xf32>,
    %c0_46 = arith.constant 0 : index
    %c0_47 = arith.constant 0 : index
    %c0_48 = arith.constant 0 : index
    %104 = vector.load %arg9[%c0_46, %c0_47, %c0_48] : memref<1x8x32xf32, #tpu.memory_space<vmem>>, vector<1x8x32xf32>
    %105 = vector.shape_cast %104 : vector<1x8x32xf32> to vector<8x32xf32>
    %c0_49 = arith.constant 0 : index
    %c0_50 = arith.constant 0 : index
    %c0_51 = arith.constant 0 : index
    %106 = vector.load %arg5[%c0_49, %c0_50, %c0_51] : memref<1x8x32xf32, #tpu.memory_space<vmem>>, vector<1x8x32xf32>
    %107 = vector.shape_cast %106 : vector<1x8x32xf32> to vector<8x32xf32>
    %108 = vector.shape_cast %105 : vector<8x32xf32> to vector<1x8x32xf32>
    tpu.vector_store %arg5[%c0_49, %c0_50, %c0_51], %108 {strides = array<i32>} : memref<1x8x32xf32, #tpu.memory_space<vmem>>, vector<1x8x32xf32>,
    return
  }
  func.func @transform_0(%arg0: i32) -> (i32, i32, i32) {
    %c0_i32 = arith.constant 0 : i32
    %c0_i32_0 = arith.constant 0 : i32
    %c0_i32_1 = arith.constant 0 : i32
    return %arg0, %c0_i32, %c0_i32_0 : i32, i32, i32
  }
  func.func @transform_1(%arg0: i32) -> (i32, i32, i32) {
    %c0_i32 = arith.constant 0 : i32
    %c0_i32_0 = arith.constant 0 : i32
    %c0_i32_1 = arith.constant 0 : i32
    return %arg0, %c0_i32, %c0_i32_0 : i32, i32, i32
  }
  func.func @transform_2(%arg0: i32) -> (i32, i32) {
    %c0_i32 = arith.constant 0 : i32
    %c0_i32_0 = arith.constant 0 : i32
    %c0_i32_1 = arith.constant 0 : i32
    return %c0_i32, %c0_i32_0 : i32, i32
  }
  func.func @transform_3(%arg0: i32) -> (i32, i32) {
    %c0_i32 = arith.constant 0 : i32
    %c0_i32_0 = arith.constant 0 : i32
    %c0_i32_1 = arith.constant 0 : i32
    return %c0_i32, %c0_i32_0 : i32, i32
  }
  func.func @transform_4(%arg0: i32) -> (i32, i32, i32) {
    %c0_i32 = arith.constant 0 : i32
    %c0_i32_0 = arith.constant 0 : i32
    %c0_i32_1 = arith.constant 0 : i32
    return %arg0, %c0_i32, %c0_i32_0 : i32, i32, i32
  }
}

module attributes {stable_mosaic.version = 11 : i64} {
  func.func @_bert_self_attn_kernel(%arg0: i32, %arg1: memref<1x8x32xbf16, #tpu.memory_space<vmem>>, %arg2: memref<1x1x8xf32, #tpu.memory_space<vmem>>, %arg3: memref<32x96xbf16, #tpu.memory_space<vmem>>, %arg4: memref<1x96xf32, #tpu.memory_space<vmem>>, %arg5: memref<1x8x32xf32, #tpu.memory_space<vmem>>, %arg6: memref<1x8x32xbf16, #tpu.memory_space<vmem>>, %arg7: memref<1x8x32xbf16, #tpu.memory_space<vmem>>, %arg8: memref<1x8x32xbf16, #tpu.memory_space<vmem>>, %arg9: memref<1x8x32xf32, #tpu.memory_space<vmem>>) attributes {dimension_semantics = [#tpu.dimension_semantics<parallel>], iteration_bounds = array<i64: 2>, scalar_prefetch = 0 : i64, scratch_operands = 4 : i64, tpu.core_type = #tpu.core_type<tc>, window_params = [{transform_indices = @transform_0, window_bounds = array<i64: 1, 8, 32>}, {transform_indices = @transform_1, window_bounds = array<i64: 1, 1, 8>}, {pipeline_mode = #tpu.pipeline_mode<synchronous>, transform_indices = @transform_2, window_bounds = array<i64: 32, 96>}, {pipeline_mode = #tpu.pipeline_mode<synchronous>, transform_indices = @transform_3, window_bounds = array<i64: 1, 96>}, {transform_indices = @transform_4, window_bounds = array<i64: 1, 8, 32>}]} {
    %c0 = arith.constant 0 : index
    %c0_0 = arith.constant 0 : index
    %c0_1 = arith.constant 0 : index
    %0 = vector.load %arg1[%c0, %c0_0, %c0_1] : memref<1x8x32xbf16, #tpu.memory_space<vmem>>, vector<1x8x32xbf16>
    %1 = vector.shape_cast %0 : vector<1x8x32xbf16> to vector<8x32xbf16>
    %c0_2 = arith.constant 0 : index
    %c0_3 = arith.constant 0 : index
    %2 = vector.load %arg3[%c0_2, %c0_3] : memref<32x96xbf16, #tpu.memory_space<vmem>>, vector<32x96xbf16>
    %cst = arith.constant dense<0.000000e+00> : vector<8x96xf32>
    %3 = tpu.matmul %1, %2, %cst {dimension_numbers = #tpu.dot_dimension_numbers<[1], [0], [0], [1], [0, 0, 1, 1], [], []>} : vector<8x32xbf16>, vector<32x96xbf16>, vector<8x96xf32> -> vector<8x96xf32>
    %c0_4 = arith.constant 0 : index
    %c0_5 = arith.constant 0 : index
    %4 = vector.load %arg4[%c0_4, %c0_5] : memref<1x96xf32, #tpu.memory_space<vmem>>, vector<1x96xf32>
    %5 = vector.broadcast %4 : vector<1x96xf32> to vector<8x96xf32>
    %6 = arith.addf %3, %5 : vector<8x96xf32>
    %7 = arith.truncf %6 : vector<8x96xf32> to vector<8x96xbf16>
    %8 = vector.extract_strided_slice %7 {offsets = [0, 0], sizes = [8, 32], strides = [1, 1]} : vector<8x96xbf16> to vector<8x32xbf16>
    %c0_6 = arith.constant 0 : index
    %c0_7 = arith.constant 0 : index
    %c0_8 = arith.constant 0 : index
    %9 = vector.load %arg6[%c0_6, %c0_7, %c0_8] : memref<1x8x32xbf16, #tpu.memory_space<vmem>>, vector<1x8x32xbf16>
    %10 = vector.shape_cast %9 : vector<1x8x32xbf16> to vector<8x32xbf16>
    %11 = vector.shape_cast %8 : vector<8x32xbf16> to vector<1x8x32xbf16>
    tpu.vector_store %arg6[%c0_6, %c0_7, %c0_8], %11 {strides = array<i32>} : memref<1x8x32xbf16, #tpu.memory_space<vmem>>, vector<1x8x32xbf16>,
    %12 = vector.extract_strided_slice %7 {offsets = [0, 32], sizes = [8, 32], strides = [1, 1]} : vector<8x96xbf16> to vector<8x32xbf16>
    %c0_9 = arith.constant 0 : index
    %c0_10 = arith.constant 0 : index
    %c0_11 = arith.constant 0 : index
    %13 = vector.load %arg7[%c0_9, %c0_10, %c0_11] : memref<1x8x32xbf16, #tpu.memory_space<vmem>>, vector<1x8x32xbf16>
    %14 = vector.shape_cast %13 : vector<1x8x32xbf16> to vector<8x32xbf16>
    %15 = vector.shape_cast %12 : vector<8x32xbf16> to vector<1x8x32xbf16>
    tpu.vector_store %arg7[%c0_9, %c0_10, %c0_11], %15 {strides = array<i32>} : memref<1x8x32xbf16, #tpu.memory_space<vmem>>, vector<1x8x32xbf16>,
    %16 = vector.extract_strided_slice %7 {offsets = [0, 64], sizes = [8, 32], strides = [1, 1]} : vector<8x96xbf16> to vector<8x32xbf16>
    %c0_12 = arith.constant 0 : index
    %c0_13 = arith.constant 0 : index
    %c0_14 = arith.constant 0 : index
    %17 = vector.load %arg8[%c0_12, %c0_13, %c0_14] : memref<1x8x32xbf16, #tpu.memory_space<vmem>>, vector<1x8x32xbf16>
    %18 = vector.shape_cast %17 : vector<1x8x32xbf16> to vector<8x32xbf16>
    %19 = vector.shape_cast %16 : vector<8x32xbf16> to vector<1x8x32xbf16>
    tpu.vector_store %arg8[%c0_12, %c0_13, %c0_14], %19 {strides = array<i32>} : memref<1x8x32xbf16, #tpu.memory_space<vmem>>, vector<1x8x32xbf16>,
    %c0_15 = arith.constant 0 : index
    %c0_16 = arith.constant 0 : index
    %c0_17 = arith.constant 0 : index
    %20 = vector.load %arg2[%c0_15, %c0_16, %c0_17] : memref<1x1x8xf32, #tpu.memory_space<vmem>>, vector<1x1x8xf32>
    %21 = vector.shape_cast %20 : vector<1x1x8xf32> to vector<1x8xf32>
    %c0_18 = arith.constant 0 : index
    %c0_19 = arith.constant 0 : index
    %c0_20 = arith.constant 0 : index
    %22 = vector.load %arg6[%c0_18, %c0_19, %c0_20] : memref<1x8x32xbf16, #tpu.memory_space<vmem>>, vector<1x8x32xbf16>
    %23 = vector.shape_cast %22 : vector<1x8x32xbf16> to vector<8x32xbf16>
    %c0_21 = arith.constant 0 : index
    %c0_22 = arith.constant 0 : index
    %c0_23 = arith.constant 0 : index
    %24 = vector.load %arg7[%c0_21, %c0_22, %c0_23] : memref<1x8x32xbf16, #tpu.memory_space<vmem>>, vector<1x8x32xbf16>
    %25 = vector.shape_cast %24 : vector<1x8x32xbf16> to vector<8x32xbf16>
    %c0_24 = arith.constant 0 : index
    %c0_25 = arith.constant 0 : index
    %c0_26 = arith.constant 0 : index
    %26 = vector.load %arg8[%c0_24, %c0_25, %c0_26] : memref<1x8x32xbf16, #tpu.memory_space<vmem>>, vector<1x8x32xbf16>
    %27 = vector.shape_cast %26 : vector<1x8x32xbf16> to vector<8x32xbf16>
    %28 = vector.extract_strided_slice %23 {offsets = [0, 0], sizes = [8, 8], strides = [1, 1]} : vector<8x32xbf16> to vector<8x8xbf16>
    %29 = vector.extract_strided_slice %25 {offsets = [0, 0], sizes = [8, 8], strides = [1, 1]} : vector<8x32xbf16> to vector<8x8xbf16>
    %30 = vector.extract_strided_slice %27 {offsets = [0, 0], sizes = [8, 8], strides = [1, 1]} : vector<8x32xbf16> to vector<8x8xbf16>
    %cst_27 = arith.constant dense<0.000000e+00> : vector<8x8xf32>
    %31 = tpu.matmul %28, %29, %cst_27 {dimension_numbers = #tpu.dot_dimension_numbers<[1], [1], [0], [0], [0, 0, 1, 0], [], []>} : vector<8x8xbf16>, vector<8x8xbf16>, vector<8x8xf32> -> vector<8x8xf32>
    %32 = vector.broadcast %21 : vector<1x8xf32> to vector<8x8xf32>
    %33 = arith.addf %31, %32 : vector<8x8xf32>
    %cst_28 = arith.constant dense<0xFF800000> : vector<8xf32>
    %34 = vector.multi_reduction <maximumf>, %33, %cst_28 [1] : vector<8x8xf32> to vector<8xf32>
    %35 = vector.shape_cast %34 : vector<8xf32> to vector<8x1xf32>
    %36 = vector.broadcast %35 : vector<8x1xf32> to vector<8x8xf32>
    %37 = arith.subf %33, %36 : vector<8x8xf32>
    %38 = math.exp %37 : vector<8x8xf32>
    %cst_29 = arith.constant dense<0.000000e+00> : vector<8xf32>
    %39 = vector.multi_reduction <add>, %38, %cst_29 [1] : vector<8x8xf32> to vector<8xf32>
    %40 = vector.shape_cast %39 : vector<8xf32> to vector<8x1xf32>
    %41 = arith.truncf %38 : vector<8x8xf32> to vector<8x8xbf16>
    %cst_30 = arith.constant dense<0.000000e+00> : vector<8x8xf32>
    %42 = tpu.matmul %41, %30, %cst_30 {dimension_numbers = #tpu.dot_dimension_numbers<[1], [0], [0], [1], [0, 0, 1, 1], [], []>} : vector<8x8xbf16>, vector<8x8xbf16>, vector<8x8xf32> -> vector<8x8xf32>
    %43 = tpu.reciprocal %40 {approx = true} : vector<8x1xf32> -> vector<8x1xf32>
    %44 = vector.broadcast %43 : vector<8x1xf32> to vector<8x8xf32>
    %45 = arith.mulf %42, %44 : vector<8x8xf32>
    %46 = vector.extract_strided_slice %23 {offsets = [0, 8], sizes = [8, 8], strides = [1, 1]} : vector<8x32xbf16> to vector<8x8xbf16>
    %47 = vector.extract_strided_slice %25 {offsets = [0, 8], sizes = [8, 8], strides = [1, 1]} : vector<8x32xbf16> to vector<8x8xbf16>
    %48 = vector.extract_strided_slice %27 {offsets = [0, 8], sizes = [8, 8], strides = [1, 1]} : vector<8x32xbf16> to vector<8x8xbf16>
    %cst_31 = arith.constant dense<0.000000e+00> : vector<8x8xf32>
    %49 = tpu.matmul %46, %47, %cst_31 {dimension_numbers = #tpu.dot_dimension_numbers<[1], [1], [0], [0], [0, 0, 1, 0], [], []>} : vector<8x8xbf16>, vector<8x8xbf16>, vector<8x8xf32> -> vector<8x8xf32>
    %50 = vector.broadcast %21 : vector<1x8xf32> to vector<8x8xf32>
    %51 = arith.addf %49, %50 : vector<8x8xf32>
    %cst_32 = arith.constant dense<0xFF800000> : vector<8xf32>
    %52 = vector.multi_reduction <maximumf>, %51, %cst_32 [1] : vector<8x8xf32> to vector<8xf32>
    %53 = vector.shape_cast %52 : vector<8xf32> to vector<8x1xf32>
    %54 = vector.broadcast %53 : vector<8x1xf32> to vector<8x8xf32>
    %55 = arith.subf %51, %54 : vector<8x8xf32>
    %56 = math.exp %55 : vector<8x8xf32>
    %cst_33 = arith.constant dense<0.000000e+00> : vector<8xf32>
    %57 = vector.multi_reduction <add>, %56, %cst_33 [1] : vector<8x8xf32> to vector<8xf32>
    %58 = vector.shape_cast %57 : vector<8xf32> to vector<8x1xf32>
    %59 = arith.truncf %56 : vector<8x8xf32> to vector<8x8xbf16>
    %cst_34 = arith.constant dense<0.000000e+00> : vector<8x8xf32>
    %60 = tpu.matmul %59, %48, %cst_34 {dimension_numbers = #tpu.dot_dimension_numbers<[1], [0], [0], [1], [0, 0, 1, 1], [], []>} : vector<8x8xbf16>, vector<8x8xbf16>, vector<8x8xf32> -> vector<8x8xf32>
    %61 = tpu.reciprocal %58 {approx = true} : vector<8x1xf32> -> vector<8x1xf32>
    %62 = vector.broadcast %61 : vector<8x1xf32> to vector<8x8xf32>
    %63 = arith.mulf %60, %62 : vector<8x8xf32>
    %64 = vector.extract_strided_slice %23 {offsets = [0, 16], sizes = [8, 8], strides = [1, 1]} : vector<8x32xbf16> to vector<8x8xbf16>
    %65 = vector.extract_strided_slice %25 {offsets = [0, 16], sizes = [8, 8], strides = [1, 1]} : vector<8x32xbf16> to vector<8x8xbf16>
    %66 = vector.extract_strided_slice %27 {offsets = [0, 16], sizes = [8, 8], strides = [1, 1]} : vector<8x32xbf16> to vector<8x8xbf16>
    %cst_35 = arith.constant dense<0.000000e+00> : vector<8x8xf32>
    %67 = tpu.matmul %64, %65, %cst_35 {dimension_numbers = #tpu.dot_dimension_numbers<[1], [1], [0], [0], [0, 0, 1, 0], [], []>} : vector<8x8xbf16>, vector<8x8xbf16>, vector<8x8xf32> -> vector<8x8xf32>
    %68 = vector.broadcast %21 : vector<1x8xf32> to vector<8x8xf32>
    %69 = arith.addf %67, %68 : vector<8x8xf32>
    %cst_36 = arith.constant dense<0xFF800000> : vector<8xf32>
    %70 = vector.multi_reduction <maximumf>, %69, %cst_36 [1] : vector<8x8xf32> to vector<8xf32>
    %71 = vector.shape_cast %70 : vector<8xf32> to vector<8x1xf32>
    %72 = vector.broadcast %71 : vector<8x1xf32> to vector<8x8xf32>
    %73 = arith.subf %69, %72 : vector<8x8xf32>
    %74 = math.exp %73 : vector<8x8xf32>
    %cst_37 = arith.constant dense<0.000000e+00> : vector<8xf32>
    %75 = vector.multi_reduction <add>, %74, %cst_37 [1] : vector<8x8xf32> to vector<8xf32>
    %76 = vector.shape_cast %75 : vector<8xf32> to vector<8x1xf32>
    %77 = arith.truncf %74 : vector<8x8xf32> to vector<8x8xbf16>
    %cst_38 = arith.constant dense<0.000000e+00> : vector<8x8xf32>
    %78 = tpu.matmul %77, %66, %cst_38 {dimension_numbers = #tpu.dot_dimension_numbers<[1], [0], [0], [1], [0, 0, 1, 1], [], []>} : vector<8x8xbf16>, vector<8x8xbf16>, vector<8x8xf32> -> vector<8x8xf32>
    %79 = tpu.reciprocal %76 {approx = true} : vector<8x1xf32> -> vector<8x1xf32>
    %80 = vector.broadcast %79 : vector<8x1xf32> to vector<8x8xf32>
    %81 = arith.mulf %78, %80 : vector<8x8xf32>
    %82 = vector.extract_strided_slice %23 {offsets = [0, 24], sizes = [8, 8], strides = [1, 1]} : vector<8x32xbf16> to vector<8x8xbf16>
    %83 = vector.extract_strided_slice %25 {offsets = [0, 24], sizes = [8, 8], strides = [1, 1]} : vector<8x32xbf16> to vector<8x8xbf16>
    %84 = vector.extract_strided_slice %27 {offsets = [0, 24], sizes = [8, 8], strides = [1, 1]} : vector<8x32xbf16> to vector<8x8xbf16>
    %cst_39 = arith.constant dense<0.000000e+00> : vector<8x8xf32>
    %85 = tpu.matmul %82, %83, %cst_39 {dimension_numbers = #tpu.dot_dimension_numbers<[1], [1], [0], [0], [0, 0, 1, 0], [], []>} : vector<8x8xbf16>, vector<8x8xbf16>, vector<8x8xf32> -> vector<8x8xf32>
    %86 = vector.broadcast %21 : vector<1x8xf32> to vector<8x8xf32>
    %87 = arith.addf %85, %86 : vector<8x8xf32>
    %cst_40 = arith.constant dense<0xFF800000> : vector<8xf32>
    %88 = vector.multi_reduction <maximumf>, %87, %cst_40 [1] : vector<8x8xf32> to vector<8xf32>
    %89 = vector.shape_cast %88 : vector<8xf32> to vector<8x1xf32>
    %90 = vector.broadcast %89 : vector<8x1xf32> to vector<8x8xf32>
    %91 = arith.subf %87, %90 : vector<8x8xf32>
    %92 = math.exp %91 : vector<8x8xf32>
    %cst_41 = arith.constant dense<0.000000e+00> : vector<8xf32>
    %93 = vector.multi_reduction <add>, %92, %cst_41 [1] : vector<8x8xf32> to vector<8xf32>
    %94 = vector.shape_cast %93 : vector<8xf32> to vector<8x1xf32>
    %95 = arith.truncf %92 : vector<8x8xf32> to vector<8x8xbf16>
    %cst_42 = arith.constant dense<0.000000e+00> : vector<8x8xf32>
    %96 = tpu.matmul %95, %84, %cst_42 {dimension_numbers = #tpu.dot_dimension_numbers<[1], [0], [0], [1], [0, 0, 1, 1], [], []>} : vector<8x8xbf16>, vector<8x8xbf16>, vector<8x8xf32> -> vector<8x8xf32>
    %97 = tpu.reciprocal %94 {approx = true} : vector<8x1xf32> -> vector<8x1xf32>
    %98 = vector.broadcast %97 : vector<8x1xf32> to vector<8x8xf32>
    %99 = arith.mulf %96, %98 : vector<8x8xf32>
    %100 = tpu.concatenate %45, %63, %81, %99 in 1 : vector<8x8xf32>, vector<8x8xf32>, vector<8x8xf32>, vector<8x8xf32> -> vector<8x32xf32>
    %c0_43 = arith.constant 0 : index
    %c0_44 = arith.constant 0 : index
    %c0_45 = arith.constant 0 : index
    %101 = vector.load %arg9[%c0_43, %c0_44, %c0_45] : memref<1x8x32xf32, #tpu.memory_space<vmem>>, vector<1x8x32xf32>
    %102 = vector.shape_cast %101 : vector<1x8x32xf32> to vector<8x32xf32>
    %103 = vector.shape_cast %100 : vector<8x32xf32> to vector<1x8x32xf32>
    tpu.vector_store %arg9[%c0_43, %c0_44, %c0_45], %103 {strides = array<i32>} : memref<1x8x32xf32, #tpu.memory_space<vmem>>, vector<1x8x32xf32>,
    %c0_46 = arith.constant 0 : index
    %c0_47 = arith.constant 0 : index
    %c0_48 = arith.constant 0 : index
    %104 = vector.load %arg9[%c0_46, %c0_47, %c0_48] : memref<1x8x32xf32, #tpu.memory_space<vmem>>, vector<1x8x32xf32>
    %105 = vector.shape_cast %104 : vector<1x8x32xf32> to vector<8x32xf32>
    %c0_49 = arith.constant 0 : index
    %c0_50 = arith.constant 0 : index
    %c0_51 = arith.constant 0 : index
    %106 = vector.load %arg5[%c0_49, %c0_50, %c0_51] : memref<1x8x32xf32, #tpu.memory_space<vmem>>, vector<1x8x32xf32>
    %107 = vector.shape_cast %106 : vector<1x8x32xf32> to vector<8x32xf32>
    %108 = vector.shape_cast %105 : vector<8x32xf32> to vector<1x8x32xf32>
    tpu.vector_store %arg5[%c0_49, %c0_50, %c0_51], %108 {strides = array<i32>} : memref<1x8x32xf32, #tpu.memory_space<vmem>>, vector<1x8x32xf32>,
    return
  }
  func.func @transform_0(%arg0: i32) -> (i32, i32, i32) {
    %c0_i32 = arith.constant 0 : i32
    %c0_i32_0 = arith.constant 0 : i32
    %c0_i32_1 = arith.constant 0 : i32
    return %arg0, %c0_i32, %c0_i32_0 : i32, i32, i32
  }
  func.func @transform_1(%arg0: i32) -> (i32, i32, i32) {
    %c0_i32 = arith.constant 0 : i32
    %c0_i32_0 = arith.constant 0 : i32
    %c0_i32_1 = arith.constant 0 : i32
    return %arg0, %c0_i32, %c0_i32_0 : i32, i32, i32
  }
  func.func @transform_2(%arg0: i32) -> (i32, i32) {
    %c0_i32 = arith.constant 0 : i32
    %c0_i32_0 = arith.constant 0 : i32
    %c0_i32_1 = arith.constant 0 : i32
    return %c0_i32, %c0_i32_0 : i32, i32
  }
  func.func @transform_3(%arg0: i32) -> (i32, i32) {
    %c0_i32 = arith.constant 0 : i32
    %c0_i32_0 = arith.constant 0 : i32
    %c0_i32_1 = arith.constant 0 : i32
    return %c0_i32, %c0_i32_0 : i32, i32
  }
  func.func @transform_4(%arg0: i32) -> (i32, i32, i32) {
    %c0_i32 = arith.constant 0 : i32
    %c0_i32_0 = arith.constant 0 : i32
    %c0_i32_1 = arith.constant 0 : i32
    return %arg0, %c0_i32, %c0_i32_0 : i32, i32, i32
  }
}

</mosaic_0001>

<llo_original>
// kernel: tpu_custom_call.1
$region0: #{tpu_custom_call.1}
  #allocation0 [shape = 'u32[]', space=smem, size = 0x4, offset = 0x4, fixed_abs, tag = 'smem constant byte address 0x4 - core index']
  #allocation1 [shape = 'u32[72,128]{1,0:T(1,128)}', space=vmem, size = 0x9000, scoped, tag = 'internal scratch']
  #allocation2 [shape = 'bf16[1,8,32]{2,1,0:T(8,128)(2,1)}', space=vmem, size = 0x800, scoped, tag = 'scratch operand']
  #allocation3 [shape = 'bf16[1,8,32]{2,1,0:T(8,128)(2,1)}', space=vmem, size = 0x800, scoped, tag = 'scratch operand']
  #allocation4 [shape = 'bf16[1,8,32]{2,1,0:T(8,128)(2,1)}', space=vmem, size = 0x800, scoped, tag = 'scratch operand']
  #allocation5 [shape = 'f32[1,8,32]{2,1,0:T(8,128)}', space=vmem, size = 0x1000, scoped, tag = 'scratch operand']
  %s0 = inlined_call_operand.hbm [shape: bf16[2,8,32], index: 0, kind: input, shape index: {}]
  %s1 = inlined_call_operand.hbm [shape: f32[2,1,8], index: 1, kind: input, shape index: {}]
  %s2 = inlined_call_operand.hbm [shape: bf16[32,96], index: 2, kind: input, shape index: {}]
  %s3 = inlined_call_operand.vmem [shape: f32[1,96], index: 3, kind: input, shape index: {}]
  %s4 = inlined_call_operand.hbm [shape: f32[2,8,32], index: 4, kind: output, shape index: {}]
  %s5 = sld [smem:[#allocation0]]
  $region61: #{tpu_custom_call.1} parent=0
    _
  %s7 = ssub.s32 1, %s5
  %s8 = scalar_select 0, %s7, %s5
  $region1: #{tpu_custom_call.1} parent=0
    #allocation6 [shape = 'u8[4096]{0}', space=vmem, size = 0x1000, scoped, tag = 'input window, operand 0']
    #allocation7 [shape = 's32[2]{0}', space=sflag, size = 0x8, scoped, tag = 'scoped memory for tpu_custom_call.1']
    #allocation8 [shape = 's32[2]{0}', space=sflag, size = 0x8, scoped, tag = 'scoped memory for tpu_custom_call.1']
    #allocation9 [shape = 'u8[1024]{0}', space=vmem, size = 0x400, scoped, tag = 'input window, operand 1']
    #allocation10 [shape = 's32[2]{0}', space=sflag, size = 0x8, scoped, tag = 'scoped memory for tpu_custom_call.1']
    #allocation11 [shape = 'u8[8192]{0}', space=vmem, size = 0x2000, scoped, tag = 'input window, operand 2, single buffered']
    #allocation12 [shape = 'u8[8192]{0}', space=vmem, size = 0x2000, scoped, tag = 'output window, operand 0']
    %9 = vsyncpa [#allocation7], 0
    %s10 = scalar_lea.sflag [#allocation7], 1
    %11 = vsyncpa %s10, 0
    %12 = vsyncpa [#allocation10], 0
    %s13 = scalar_lea.sflag [#allocation10], 1
    %14 = vsyncpa %s13, 0
    %15 = vsyncpa [#allocation8], 0
    %s16 = scalar_lea.sflag [#allocation8], 1
    %17 = vsyncpa %s16, 0
    loop: start=0, step=1, limit=4
    $region2: #{tpu_custom_call.1} parent=1 // loop_pre_header
      _
    $region3: #{tpu_custom_call.1} parent=1 // loop_header
      %s19 = sphi 0, %s23
      %p20 = scmp.ge.s32.totalorder %s19, 4
      %s29 = sphi 0, %s31
      %s32 = sphi 0, %s29
      %s33 = sphi 0, %s32
      %s49 = sphi 0, %s33
      %s55 = sphi 0, %s57
      %s58 = sphi 0, %s55
      %s59 = sphi 0, %s58
      %s75 = sphi 0, %s59
      %s79 = sphi 0, %s79
      %s81 = sphi 0, %s79
      %s82 = sphi 0, %s81
      %s96 = sphi 0, %s82
      %s100 = sphi 0, %s100
      %s102 = sphi 0, %s100
      %s103 = sphi 0, %s102
      %s117 = sphi 0, %s103
      %s123 = sphi 0, %s125
      %s126 = sphi 0, %s123
      %s127 = sphi 0, %s126
      %s143 = sphi 0, %s127
    $region4: #{tpu_custom_call.1} parent=1 // loop_header_branch
      %22 = sbr.rel (%p20) target = $region8
    $region5: #{tpu_custom_call.1} parent=1 // loop_body
      %s24 = ssub.s32 %s19, 1
      %s25 = ssub.s32 %s19, 2
      %s26 = sadd.s32 %s19, 1
      %s27 = ssub.s32 %s19, %s26
      %p28 = scmp.eq.s32.totalorder %s27, 0
      %s30 = sadd.s32 %s29, 1
      %s31 = scalar_select %p28, %s29, %s30
      %p34 = pneg %p28
      %p35 = scmp.eq.s32.totalorder %s19, 1
      %p36 = por %p34, %p35
      %p37 = scmp.ne.s32.totalorder %s29, %s32
      %p38 = scmp.eq.s32.totalorder %s19, 0
      %p39 = por %p37, %p38
      %p40 = scmp.ne.s32.totalorder %s29, %s32
      %p41 = scmp.eq.s32.totalorder %s24, 1
      %p42 = por %p40, %p41
      %p43 = scmp.ne.s32.totalorder %s32, %s33
      %p44 = scmp.eq.s32.totalorder %s24, 0
      %p45 = por %p43, %p44
      %p46 = scmp.ne.s32.totalorder %s32, %s33
      %p47 = scmp.eq.s32.totalorder %s25, 1
      %p48 = por %p46, %p47
      %p50 = scmp.ne.s32.totalorder %s33, %s49
      %p51 = scmp.eq.s32.totalorder %s25, 0
      %p52 = por %p50, %p51
      %s53 = ssub.s32 %s19, %s26
      %p54 = scmp.eq.s32.totalorder %s53, 0
      %s56 = sadd.s32 %s55, 1
      %s57 = scalar_select %p54, %s55, %s56
      %p60 = pneg %p54
      %p61 = scmp.eq.s32.totalorder %s19, 1
      %p62 = por %p60, %p61
      %p63 = scmp.ne.s32.totalorder %s55, %s58
      %p64 = scmp.eq.s32.totalorder %s19, 0
      %p65 = por %p63, %p64
      %p66 = scmp.ne.s32.totalorder %s55, %s58
      %p67 = scmp.eq.s32.totalorder %s24, 1
      %p68 = por %p66, %p67
      %p69 = scmp.ne.s32.totalorder %s58, %s59
      %p70 = scmp.eq.s32.totalorder %s24, 0
      %p71 = por %p69, %p70
      %p72 = scmp.ne.s32.totalorder %s58, %s59
      %p73 = scmp.eq.s32.totalorder %s25, 1
      %p74 = por %p72, %p73
      %p76 = scmp.ne.s32.totalorder %s59, %s75
      %p77 = scmp.eq.s32.totalorder %s25, 0
      %p78 = por %p76, %p77
      %s80 = sadd.s32 %s79, 1
      %p83 = scmp.eq.s32.totalorder %s19, 1
      %p84 = scmp.ne.s32.totalorder %s79, %s81
      %p85 = scmp.eq.s32.totalorder %s19, 0
      %p86 = por %p84, %p85
      %p87 = scmp.ne.s32.totalorder %s79, %s81
      %p88 = scmp.eq.s32.totalorder %s24, 1
      %p89 = por %p87, %p88
      %p90 = scmp.ne.s32.totalorder %s81, %s82
      %p91 = scmp.eq.s32.totalorder %s24, 0
      %p92 = por %p90, %p91
      %p93 = scmp.ne.s32.totalorder %s81, %s82
      %p94 = scmp.eq.s32.totalorder %s25, 1
      %p95 = por %p93, %p94
      %p97 = scmp.ne.s32.totalorder %s82, %s96
      %p98 = scmp.eq.s32.totalorder %s25, 0
      %p99 = por %p97, %p98
      %s101 = sadd.s32 %s100, 1
      %p104 = scmp.eq.s32.totalorder %s19, 1
      %p105 = scmp.ne.s32.totalorder %s100, %s102
      %p106 = scmp.eq.s32.totalorder %s19, 0
      %p107 = por %p105, %p106
      %p108 = scmp.ne.s32.totalorder %s100, %s102
      %p109 = scmp.eq.s32.totalorder %s24, 1
      %p110 = por %p108, %p109
      %p111 = scmp.ne.s32.totalorder %s102, %s103
      %p112 = scmp.eq.s32.totalorder %s24, 0
      %p113 = por %p111, %p112
      %p114 = scmp.ne.s32.totalorder %s102, %s103
      %p115 = scmp.eq.s32.totalorder %s25, 1
      %p116 = por %p114, %p115
      %p118 = scmp.ne.s32.totalorder %s103, %s117
      %p119 = scmp.eq.s32.totalorder %s25, 0
      %p120 = por %p118, %p119
      %s121 = ssub.s32 %s19, %s26
      %p122 = scmp.eq.s32.totalorder %s121, 0
      %s124 = sadd.s32 %s123, 1
      %s125 = scalar_select %p122, %s123, %s124
      %p128 = pneg %p122
      %p129 = scmp.eq.s32.totalorder %s19, 1
      %p130 = por %p128, %p129
      %p131 = scmp.ne.s32.totalorder %s123, %s126
      %p132 = scmp.eq.s32.totalorder %s19, 0
      %p133 = por %p131, %p132
      %p134 = scmp.ne.s32.totalorder %s123, %s126
      %p135 = scmp.eq.s32.totalorder %s24, 1
      %p136 = por %p134, %p135
      %p137 = scmp.ne.s32.totalorder %s126, %s127
      %p138 = scmp.eq.s32.totalorder %s24, 0
      %p139 = por %p137, %p138
      %p140 = scmp.ne.s32.totalorder %s126, %s127
      %p141 = scmp.eq.s32.totalorder %s25, 1
      %p142 = por %p140, %p141
      %p144 = scmp.ne.s32.totalorder %s127, %s143
      %p145 = scmp.eq.s32.totalorder %s25, 0
      %p146 = por %p144, %p145
      %p147 = scmp.le.s32.totalorder 1, %s19
      %p148 = scmp.lt.s32.totalorder %s19, 3
      %p149 = pnand %p147, %p148
      %p150 = pneg %p149
      // Predicated region
      $region9: #{tpu_custom_call.1} parent=5 // pred_check
        _
      $region10: #{tpu_custom_call.1} parent=5 // pred_check_branch
        %152 = sbr.rel (%p149) target = $region12
      $region11: #{tpu_custom_call.1} parent=5 // pred_region
        %s153 = ssub.s32 %s19, 1
        // Predicated region
        $region13: #{tpu_custom_call.1} parent=11 // pred_check
          %p154 = pneg %p92
        $region14: #{tpu_custom_call.1} parent=11 // pred_check_branch
          %156 = sbr.rel (%p154) target = $region16
        $region15: #{tpu_custom_call.1} parent=11 // pred_region
          %158 = vsyncadd [#allocation10], 0
          %s159 = sshll.u32 %s2, 4
          %s160 = int_to_ptr.hbm [resolvable:$true] %s159
          %s161 = sshll.u32 [#allocation11], 4
          %s162 = int_to_ptr.vmem [resolvable:$true] %s161
          %167 = dma.hbm_to_vmem [thread:$0]  %s160, 256, %s162, [#allocation10], 64, 64, 4
        $region16: #{tpu_custom_call.1} parent=11 // pred_fallthru
          _
        // Predicated region
        $region17: #{tpu_custom_call.1} parent=11 // pred_check
          %p168 = pneg %p113
        $region18: #{tpu_custom_call.1} parent=11 // pred_check_branch
          %170 = sbr.rel (%p168) target = $region20
        $region19: #{tpu_custom_call.1} parent=11 // pred_region
          _
        $region20: #{tpu_custom_call.1} parent=11 // pred_fallthru
          _
      $region12: #{tpu_custom_call.1} parent=5 // pred_fallthru
        _
      %p171 = scmp.lt.s32.totalorder %s19, 2
      // Predicated region
      $region21: #{tpu_custom_call.1} parent=5 // pred_check
        %p172 = pneg %p171
      $region22: #{tpu_custom_call.1} parent=5 // pred_check_branch
        %174 = sbr.rel (%p172) target = $region24
      $region23: #{tpu_custom_call.1} parent=5 // pred_region
        // Predicated region
        $region25: #{tpu_custom_call.1} parent=23 // pred_check
          %p175 = pneg %p39
        $region26: #{tpu_custom_call.1} parent=23 // pred_check_branch
          %177 = sbr.rel (%p175) target = $region28
        $region27: #{tpu_custom_call.1} parent=23 // pred_region
          %s178 = sand.u32 %s29, 1
          %s179 = scalar_lea.sflag [#allocation7], %s178
          %s180 = sand.u32 %s29, 1
          %s181 = smul.addr %s180, 4
          %s182 = scalar_lea.vmem [#allocation6], %s181
          %184 = vsyncadd %s179, 0
          %s185 = smul.addr %s19, 4
          %s186 = scalar_lea.hbm %s0, %s185
          %s188 = sshll.u32 %s186, 4
          %s189 = int_to_ptr.hbm [resolvable:$true] %s188
          %s190 = sshll.u32 %s182, 4
          %s191 = int_to_ptr.vmem [resolvable:$true] %s190
          %193 = dma.hbm_to_vmem [thread:$0]  %s189, 64, %s191, %s179
        $region28: #{tpu_custom_call.1} parent=23 // pred_fallthru
          _
        // Predicated region
        $region29: #{tpu_custom_call.1} parent=23 // pred_check
          %p194 = pneg %p65
        $region30: #{tpu_custom_call.1} parent=23 // pred_check_branch
          %196 = sbr.rel (%p194) target = $region32
        $region31: #{tpu_custom_call.1} parent=23 // pred_region
          %s197 = sand.u32 %s19, 1
          %s198 = scalar_lea.sflag [#allocation10], %s197
          %s199 = sand.u32 %s55, 1
          %s200 = scalar_lea.vmem [#allocation9], %s199
          %202 = vsyncadd %s198, 0
          %s203 = scalar_lea.hbm %s1, %s19
          %s205 = sshll.u32 %s203, 4
          %s206 = int_to_ptr.hbm [resolvable:$true] %s205
          %s207 = sshll.u32 %s200, 4
          %s208 = int_to_ptr.vmem [resolvable:$true] %s207
          %210 = dma.hbm_to_vmem [thread:$0]  %s206, 16, %s208, %s198
        $region32: #{tpu_custom_call.1} parent=23 // pred_fallthru
          _
      $region24: #{tpu_custom_call.1} parent=5 // pred_fallthru
        _
      %p211 = scmp.le.s32.totalorder 1, %s19
      %p212 = scmp.lt.s32.totalorder %s19, 3
      %p213 = pnand %p211, %p212
      %p214 = pneg %p213
      // Predicated region
      $region33: #{tpu_custom_call.1} parent=5 // pred_check
        _
      $region34: #{tpu_custom_call.1} parent=5 // pred_check_branch
        %216 = sbr.rel (%p213) target = $region36
      $region35: #{tpu_custom_call.1} parent=5 // pred_region
        %s217 = ssub.s32 %s19, 1
        %s218 = sand.u32 %s32, 1
        %s219 = scalar_lea.sflag [#allocation7], %s218
        %s220 = sand.u32 %s32, 1
        %s221 = smul.addr %s220, 4
        %s222 = scalar_lea.vmem [#allocation6], %s221
        // Predicated region
        $region37: #{tpu_custom_call.1} parent=35 // pred_check
          %p223 = pneg %p45
        $region38: #{tpu_custom_call.1} parent=35 // pred_check_branch
          %225 = sbr.rel (%p223) target = $region40
        $region39: #{tpu_custom_call.1} parent=35 // pred_region
          %227 = dma.done %s219, 64
        $region40: #{tpu_custom_call.1} parent=35 // pred_fallthru
          _
        %s228 = sand.u32 %s24, 1
        %s229 = scalar_lea.sflag [#allocation10], %s228
        %s230 = sand.u32 %s58, 1
        %s231 = scalar_lea.vmem [#allocation9], %s230
        // Predicated region
        $region41: #{tpu_custom_call.1} parent=35 // pred_check
          %p232 = pneg %p71
        $region42: #{tpu_custom_call.1} parent=35 // pred_check_branch
          %234 = sbr.rel (%p232) target = $region44
        $region43: #{tpu_custom_call.1} parent=35 // pred_region
          %236 = dma.done %s229, 16
        $region44: #{tpu_custom_call.1} parent=35 // pred_fallthru
          _
        // Predicated region
        $region45: #{tpu_custom_call.1} parent=35 // pred_check
          %p237 = pneg %p92
        $region46: #{tpu_custom_call.1} parent=35 // pred_check_branch
          %239 = sbr.rel (%p237) target = $region48
        $region47: #{tpu_custom_call.1} parent=35 // pred_region
          %241 = dma.done [#allocation10], 256
        $region48: #{tpu_custom_call.1} parent=35 // pred_fallthru
          _
        %s242 = sand.u32 %s32, 1
        %s243 = scalar_lea.sflag [#allocation7], %s242
        %s244 = sand.u32 %s32, 1
        %s245 = smul.addr %s244, 4
        %s246 = scalar_lea.vmem [#allocation6], %s245
        %p247 = pneg %p45
        %p248 = pneg %p42
        %s249 = sand.u32 %s24, 1
        %s250 = scalar_lea.sflag [#allocation10], %s249
        %s251 = sand.u32 %s58, 1
        %s252 = scalar_lea.vmem [#allocation9], %s251
        %p253 = pneg %p71
        %p254 = pneg %p68
        %p255 = pneg %p92
        %p256 = pneg %p89
        %p257 = pneg %p113
        %p258 = pneg %p110
        %p259 = pneg %p139
        %p260 = pneg %p136
        %s261 = sand.u32 %s126, 1
        %s262 = scalar_lea.sflag [#allocation8], %s261
        %s263 = sand.u32 %s126, 1
        %s264 = smul.addr %s263, 8
        %s265 = scalar_lea.vmem [#allocation12], %s264
        %v267 = vld [vmem:[%s222] sm:$0xf]
        %v268 = vld [vmem:[#allocation11] sm:$0xf]
        %v269 = vld [vmem:[#allocation11 + $0x4] sm:$0xf]
        %v270 = vld [vmem:[#allocation11 + $0x8] sm:$0xf]
        %v271 = vld [vmem:[#allocation11 + $0xc] sm:$0xf]
        %v272 = vld [vmem:[%s3] sm:$0x1]
        %v274 = vperm.slane %v272, 0
        %v280 = vunpack.c.l.b16 %v268
        %v281 = vunpack.c.l.b16 %v269
        %v282 = vunpack.c.l.b16 %v270
        %v283 = vunpack.c.l.b16 %v271
        %v284 = vpack.c.b16 %v281, %v280
        %v285 = vpack.c.b16 %v283, %v282
        %vm288 = vcmask 261120
        %v290 = vsel %vm288, %v267, 0
        %292 = vmatpush.bf16.msra.mxu0 0
        %293 = vmatpush.bf16.msra.mxu0 0
        %294 = vmatpush.bf16.msra.mxu0 0
        %295 = vmatpush.bf16.msra.mxu0 0
        %296 = vmatpush.bf16.msra.mxu0 0
        %297 = vmatpush.bf16.msra.mxu0 0
        %298 = vmatpush.bf16.msra.mxu0 %v285
        %299 = vmatpush.bf16.msra.mxu0 %v284
        %300 = vmatmul.bf16.gmra.mxu0 %v290
        %v301 = vpop.f32.mrf.mxu0
        %v302 = vadd.f32 %v274, %v301
        %v303 = vpop.f32.mrf.mxu0
        %304 = vdwg.mxu0
        %v305 = vpack.c.bf16 %v302, %v302
        %vm306 = vcmask 257024
        %307 = vst.msk [vmem:[#allocation2] sm:$0xf] %vm306, %v305
        %309 = vrot.lane.b32.xlu0 %v305, 96
        %v310 = vpop.permute.xlu0 %309
        %312 = vst.msk [vmem:[#allocation3] sm:$0xf] %vm306, %v310
        %313 = vrot.lane.b32.xlu0 %v305, 64
        %v314 = vpop.permute.xlu0 %313
        %316 = vst.msk [vmem:[#allocation4] sm:$0xf] %vm306, %v314
        %v317 = vld [vmem:[%s231] sm:$0x1]
        %v318 = vld [vmem:[#allocation2] sm:$0xf]
        %v319 = vld [vmem:[#allocation3] sm:$0xf]
        %v320 = vld [vmem:[#allocation4] sm:$0xf]
        %v322 = vperm.slane %v317, 0
        %vm324 = vcmask 64512
        %v326 = vsel %vm324, %v318, 0
        %v329 = vsel %vm324, %v319, 0
        %331 = vmatpush.bf16.xpose.msra.mxu0 0
        %332 = vmatpush.bf16.xpose.msra.mxu0 0
        %333 = vmatpush.bf16.xpose.msra.mxu0 0
        %334 = vmatpush.bf16.xpose.msra.mxu0 0
        %335 = vmatpush.bf16.xpose.msra.mxu0 0
        %336 = vmatpush.bf16.xpose.msra.mxu0 0
        %337 = vmatpush.bf16.xpose.msra.mxu0 0
        %338 = vmatpush.bf16.xpose.msra.mxu0 %v329
        %339 = vmatmul.bf16.gmra.mxu0 %v326
        %v340 = vpop.f32.mrf.mxu0
        %v341 = vadd.f32 %v322, %v340
        %v342 = vpop.f32.mrf.mxu0
        %343 = vdwg.mxu0
        %v344 = vsel %vm324, %v341, -inf
        %345 = vmax.xlane.f32.xlu0 %v344
        %v346 = vpop.xlane.xlu0 %345
        %v347 = vsub.f32 %v341, %v346
        %v348 = vmul.f32 %v347, 1.442695
        %v349 = vpow.pop %v348
        %v350 = vsel %vm324, %v349, 0.0
        %351 = vadd.xlane.f32.xlu0 %v350
        %v352 = vpop.xlane.xlu0 %351
        %v353 = vpack.c.bf16 %v349, %v349
        %v355 = vsel %vm324, %v353, 0
        %vm357 = vcmask 1043456
        %v359 = vsel %vm357, %v320, 0
        %361 = vmatpush.bf16.msra.mxu0 0
        %362 = vmatpush.bf16.msra.mxu0 0
        %363 = vmatpush.bf16.msra.mxu0 0
        %364 = vmatpush.bf16.msra.mxu0 0
        %365 = vmatpush.bf16.msra.mxu0 0
        %366 = vmatpush.bf16.msra.mxu0 0
        %367 = vmatpush.bf16.msra.mxu0 0
        %368 = vmatpush.bf16.msra.mxu0 %v359
        %369 = vmatmul.bf16.gmra.mxu0 %v355
        %v370 = vpop.f32.mrf.mxu0
        %v371 = vadd.f32 0.0, %v370
        %v372 = vpop.f32.mrf.mxu0
        %373 = vdwg.mxu0
        %v374 = vrcp.pop %v352
        %v375 = vmul.f32 %v371, %v374
        %v377 = vunpack.c.l.b16 %v318
        %v378 = vpack.c.b16 %v377, %v377
        %379 = vrot.lane.b32.xlu0 %v378, 120
        %v380 = vpop.permute.xlu0 %379
        %v382 = vunpack.c.l.b16 %v319
        %v383 = vpack.c.b16 %v382, %v382
        %384 = vrot.lane.b32.xlu0 %v383, 120
        %v385 = vpop.permute.xlu0 %384
        %v387 = vsel %vm324, %v380, 0
        %v390 = vsel %vm324, %v385, 0
        %392 = vmatpush.bf16.xpose.msra.mxu0 0
        %393 = vmatpush.bf16.xpose.msra.mxu0 0
        %394 = vmatpush.bf16.xpose.msra.mxu0 0
        %395 = vmatpush.bf16.xpose.msra.mxu0 0
        %396 = vmatpush.bf16.xpose.msra.mxu0 0
        %397 = vmatpush.bf16.xpose.msra.mxu0 0
        %398 = vmatpush.bf16.xpose.msra.mxu0 0
        %399 = vmatpush.bf16.xpose.msra.mxu0 %v390
        %400 = vmatmul.bf16.gmra.mxu0 %v387
        %v401 = vpop.f32.mrf.mxu0
        %v402 = vadd.f32 %v322, %v401
        %v403 = vpop.f32.mrf.mxu0
        %404 = vdwg.mxu0
        %v405 = vsel %vm324, %v402, -inf
        %406 = vmax.xlane.f32.xlu0 %v405
        %v407 = vpop.xlane.xlu0 %406
        %v408 = vsub.f32 %v402, %v407
        %v409 = vmul.f32 %v408, 1.442695
        %v410 = vpow.pop %v409
        %v411 = vsel %vm324, %v410, 0.0
        %412 = vadd.xlane.f32.xlu0 %v411
        %v413 = vpop.xlane.xlu0 %412
        %v414 = vpack.c.bf16 %v410, %v410
        %v416 = vunpack.c.l.b16 %v320
        %v417 = vpack.c.b16 %v416, %v416
        %418 = vrot.lane.b32.xlu0 %v417, 120
        %v419 = vpop.permute.xlu0 %418
        %v421 = vsel %vm324, %v414, 0
        %v424 = vsel %vm357, %v419, 0
        %426 = vmatpush.bf16.msra.mxu0 0
        %427 = vmatpush.bf16.msra.mxu0 0
        %428 = vmatpush.bf16.msra.mxu0 0
        %429 = vmatpush.bf16.msra.mxu0 0
        %430 = vmatpush.bf16.msra.mxu0 0
        %431 = vmatpush.bf16.msra.mxu0 0
        %432 = vmatpush.bf16.msra.mxu0 0
        %433 = vmatpush.bf16.msra.mxu0 %v424
        %434 = vmatmul.bf16.gmra.mxu0 %v421
        %v435 = vpop.f32.mrf.mxu0
        %v436 = vadd.f32 0.0, %v435
        %v437 = vpop.f32.mrf.mxu0
        %438 = vdwg.mxu0
        %v439 = vrcp.pop %v413
        %v440 = vmul.f32 %v436, %v439
        %441 = vrot.lane.b32.xlu0 %v378, 112
        %v442 = vpop.permute.xlu0 %441
        %443 = vrot.lane.b32.xlu0 %v383, 112
        %v444 = vpop.permute.xlu0 %443
        %v446 = vsel %vm324, %v442, 0
        %v449 = vsel %vm324, %v444, 0
        %451 = vmatpush.bf16.xpose.msra.mxu0 0
        %452 = vmatpush.bf16.xpose.msra.mxu0 0
        %453 = vmatpush.bf16.xpose.msra.mxu0 0
        %454 = vmatpush.bf16.xpose.msra.mxu0 0
        %455 = vmatpush.bf16.xpose.msra.mxu0 0
        %456 = vmatpush.bf16.xpose.msra.mxu0 0
        %457 = vmatpush.bf16.xpose.msra.mxu0 0
        %458 = vmatpush.bf16.xpose.msra.mxu0 %v449
        %459 = vmatmul.bf16.gmra.mxu0 %v446
        %v460 = vpop.f32.mrf.mxu0
        %v461 = vadd.f32 %v322, %v460
        %v462 = vpop.f32.mrf.mxu0
        %463 = vdwg.mxu0
        %v464 = vsel %vm324, %v461, -inf
        %465 = vmax.xlane.f32.xlu0 %v464
        %v466 = vpop.xlane.xlu0 %465
        %v467 = vsub.f32 %v461, %v466
        %v468 = vmul.f32 %v467, 1.442695
        %v469 = vpow.pop %v468
        %v470 = vsel %vm324, %v469, 0.0
        %471 = vadd.xlane.f32.xlu0 %v470
        %v472 = vpop.xlane.xlu0 %471
        %v473 = vpack.c.bf16 %v469, %v469
        %474 = vrot.lane.b32.xlu0 %v417, 112
        %v475 = vpop.permute.xlu0 %474
        %v477 = vsel %vm324, %v473, 0
        %v480 = vsel %vm357, %v475, 0
        %482 = vmatpush.bf16.msra.mxu0 0
        %483 = vmatpush.bf16.msra.mxu0 0
        %484 = vmatpush.bf16.msra.mxu0 0
        %485 = vmatpush.bf16.msra.mxu0 0
        %486 = vmatpush.bf16.msra.mxu0 0
        %487 = vmatpush.bf16.msra.mxu0 0
        %488 = vmatpush.bf16.msra.mxu0 0
        %489 = vmatpush.bf16.msra.mxu0 %v480
        %490 = vmatmul.bf16.gmra.mxu0 %v477
        %v491 = vpop.f32.mrf.mxu0
        %v492 = vadd.f32 0.0, %v491
        %v493 = vpop.f32.mrf.mxu0
        %494 = vdwg.mxu0
        %v495 = vrcp.pop %v472
        %v496 = vmul.f32 %v492, %v495
        %497 = vrot.lane.b32.xlu0 %v378, 104
        %v498 = vpop.permute.xlu0 %497
        %499 = vrot.lane.b32.xlu0 %v383, 104
        %v500 = vpop.permute.xlu0 %499
        %v502 = vsel %vm324, %v498, 0
        %v505 = vsel %vm324, %v500, 0
        %507 = vmatpush.bf16.xpose.msra.mxu0 0
        %508 = vmatpush.bf16.xpose.msra.mxu0 0
        %509 = vmatpush.bf16.xpose.msra.mxu0 0
        %510 = vmatpush.bf16.xpose.msra.mxu0 0
        %511 = vmatpush.bf16.xpose.msra.mxu0 0
        %512 = vmatpush.bf16.xpose.msra.mxu0 0
        %513 = vmatpush.bf16.xpose.msra.mxu0 0
        %514 = vmatpush.bf16.xpose.msra.mxu0 %v505
        %515 = vmatmul.bf16.gmra.mxu0 %v502
        %v516 = vpop.f32.mrf.mxu0
        %v517 = vadd.f32 %v322, %v516
        %v518 = vpop.f32.mrf.mxu0
        %519 = vdwg.mxu0
        %v520 = vsel %vm324, %v517, -inf
        %521 = vmax.xlane.f32.xlu0 %v520
        %v522 = vpop.xlane.xlu0 %521
        %v523 = vsub.f32 %v517, %v522
        %v524 = vmul.f32 %v523, 1.442695
        %v525 = vpow.pop %v524
        %v526 = vsel %vm324, %v525, 0.0
        %527 = vadd.xlane.f32.xlu0 %v526
        %v528 = vpop.xlane.xlu0 %527
        %v529 = vpack.c.bf16 %v525, %v525
        %530 = vrot.lane.b32.xlu0 %v417, 104
        %v531 = vpop.permute.xlu0 %530
        %v533 = vsel %vm324, %v529, 0
        %v536 = vsel %vm357, %v531, 0
        %538 = vmatpush.bf16.msra.mxu0 0
        %539 = vmatpush.bf16.msra.mxu0 0
        %540 = vmatpush.bf16.msra.mxu0 0
        %541 = vmatpush.bf16.msra.mxu0 0
        %542 = vmatpush.bf16.msra.mxu0 0
        %543 = vmatpush.bf16.msra.mxu0 0
        %544 = vmatpush.bf16.msra.mxu0 0
        %545 = vmatpush.bf16.msra.mxu0 %v536
        %546 = vmatmul.bf16.gmra.mxu0 %v533
        %v547 = vpop.f32.mrf.mxu0
        %v548 = vadd.f32 0.0, %v547
        %v549 = vpop.f32.mrf.mxu0
        %550 = vdwg.mxu0
        %v551 = vrcp.pop %v528
        %v552 = vmul.f32 %v548, %v551
        %554 = vrot.lane.b32.xlu0 %v440, 8
        %v555 = vpop.permute.xlu0 %554
        %558 = vrot.lane.b32.xlu0 %v496, 16
        %v559 = vpop.permute.xlu0 %558
        %562 = vrot.lane.b32.xlu0 %v552, 24
        %v563 = vpop.permute.xlu0 %562
        %v565 = vsel %vm324, %v375, %v555
        %vm566 = vcmask 130048
        %v567 = vsel %vm566, %v565, %v559
        %vm568 = vcmask 195584
        %v569 = vsel %vm568, %v567, %v563
        %570 = vst.msk [vmem:[#allocation5] sm:$0xff] %vm288, %v569
        %v571 = vld [vmem:[#allocation5] sm:$0xff]
        %572 = vst.msk [vmem:[%s265] sm:$0xff] %vm288, %v571
        %s573 = sand.u32 %s126, 1
        %s574 = scalar_lea.sflag [#allocation8], %s573
        %s575 = sand.u32 %s126, 1
        %s576 = smul.addr %s575, 8
        %s577 = scalar_lea.vmem [#allocation12], %s576
        // Predicated region
        $region49: #{tpu_custom_call.1} parent=35 // pred_check
          %p578 = pneg %p136
        $region50: #{tpu_custom_call.1} parent=35 // pred_check_branch
          %580 = sbr.rel (%p578) target = $region52
        $region51: #{tpu_custom_call.1} parent=35 // pred_region
          %582 = vsyncadd %s574, 0
          %s583 = smul.addr %s24, 8
          %s584 = scalar_lea.hbm %s4, %s583
          %s586 = sshll.u32 %s577, 4
          %s587 = int_to_ptr.vmem [resolvable:$true] %s586
          %s588 = sshll.u32 %s584, 4
          %s589 = int_to_ptr.hbm [resolvable:$true] %s588
          %591 = dma.vmem_to_hbm [thread:$0]  %s587, 128, %s589, %s574
        $region52: #{tpu_custom_call.1} parent=35 // pred_fallthru
          _
      $region36: #{tpu_custom_call.1} parent=5 // pred_fallthru
        _
      %p592 = scmp.le.s32.totalorder 2, %s19
      // Predicated region
      $region53: #{tpu_custom_call.1} parent=5 // pred_check
        %p593 = pneg %p592
      $region54: #{tpu_custom_call.1} parent=5 // pred_check_branch
        %595 = sbr.rel (%p593) target = $region56
      $region55: #{tpu_custom_call.1} parent=5 // pred_region
        %s596 = ssub.s32 %s19, 2
        // Predicated region
        $region57: #{tpu_custom_call.1} parent=55 // pred_check
          %p597 = pneg %p142
        $region58: #{tpu_custom_call.1} parent=55 // pred_check_branch
          %599 = sbr.rel (%p597) target = $region60
        $region59: #{tpu_custom_call.1} parent=55 // pred_region
          %s600 = sand.u32 %s127, 1
          %s601 = scalar_lea.sflag [#allocation8], %s600
          %s602 = sand.u32 %s127, 1
          %s603 = smul.addr %s602, 8
          %s604 = scalar_lea.vmem [#allocation12], %s603
          %606 = dma.done %s601, 128
        $region60: #{tpu_custom_call.1} parent=55 // pred_fallthru
          _
      $region56: #{tpu_custom_call.1} parent=5 // pred_fallthru
        _
    $region6: #{tpu_custom_call.1} parent=1 // loop_footer
      %s23 = sadd.s32 1, %s19
    $region7: #{tpu_custom_call.1} parent=1 // loop_footer_branch
      %18 = sbr.rel target = $region3
    $region8: #{tpu_custom_call.1} parent=1 // loop_exit
      _
    %607 = vsyncpa [#allocation7], 1
    %s608 = scalar_lea.sflag [#allocation7], 1
    %609 = vsyncpa %s608, 1
    %610 = vsyncpa [#allocation10], 1
    %s611 = scalar_lea.sflag [#allocation10], 1
    %612 = vsyncpa %s611, 1
    %613 = vsyncpa [#allocation8], 1
    %s614 = scalar_lea.sflag [#allocation8], 1
    %615 = vsyncpa %s614, 1

// kernel: tpu_custom_call.1
$region0: #{tpu_custom_call.1}
  #allocation0 [shape = 'u32[]', space=smem, size = 0x4, offset = 0x4, fixed_abs, tag = 'smem constant byte address 0x4 - core index']
  #allocation1 [shape = 'u32[72,128]{1,0:T(1,128)}', space=vmem, size = 0x9000, scoped, tag = 'internal scratch']
  #allocation2 [shape = 'bf16[1,8,32]{2,1,0:T(8,128)(2,1)}', space=vmem, size = 0x800, scoped, tag = 'scratch operand']
  #allocation3 [shape = 'bf16[1,8,32]{2,1,0:T(8,128)(2,1)}', space=vmem, size = 0x800, scoped, tag = 'scratch operand']
  #allocation4 [shape = 'bf16[1,8,32]{2,1,0:T(8,128)(2,1)}', space=vmem, size = 0x800, scoped, tag = 'scratch operand']
  #allocation5 [shape = 'f32[1,8,32]{2,1,0:T(8,128)}', space=vmem, size = 0x1000, scoped, tag = 'scratch operand']
  %s0 = inlined_call_operand.hbm [shape: bf16[2,8,32], index: 0, kind: input, shape index: {}]
  %s1 = inlined_call_operand.hbm [shape: f32[2,1,8], index: 1, kind: input, shape index: {}]
  %s2 = inlined_call_operand.hbm [shape: bf16[32,96], index: 2, kind: input, shape index: {}]
  %s3 = inlined_call_operand.vmem [shape: f32[1,96], index: 3, kind: input, shape index: {}]
  %s4 = inlined_call_operand.hbm [shape: f32[2,8,32], index: 4, kind: output, shape index: {}]
  %s5 = sld [smem:[#allocation0]]
  $region61: #{tpu_custom_call.1} parent=0
    _
  %s7 = ssub.s32 1, %s5
  %s8 = scalar_select 0, %s7, %s5
  $region1: #{tpu_custom_call.1} parent=0
    #allocation6 [shape = 'u8[4096]{0}', space=vmem, size = 0x1000, scoped, tag = 'input window, operand 0']
    #allocation7 [shape = 's32[2]{0}', space=sflag, size = 0x8, scoped, tag = 'scoped memory for tpu_custom_call.1']
    #allocation8 [shape = 's32[2]{0}', space=sflag, size = 0x8, scoped, tag = 'scoped memory for tpu_custom_call.1']
    #allocation9 [shape = 'u8[1024]{0}', space=vmem, size = 0x400, scoped, tag = 'input window, operand 1']
    #allocation10 [shape = 's32[2]{0}', space=sflag, size = 0x8, scoped, tag = 'scoped memory for tpu_custom_call.1']
    #allocation11 [shape = 'u8[8192]{0}', space=vmem, size = 0x2000, scoped, tag = 'input window, operand 2, single buffered']
    #allocation12 [shape = 'u8[8192]{0}', space=vmem, size = 0x2000, scoped, tag = 'output window, operand 0']
    %9 = vsyncpa [#allocation7], 0
    %s10 = scalar_lea.sflag [#allocation7], 1
    %11 = vsyncpa %s10, 0
    %12 = vsyncpa [#allocation10], 0
    %s13 = scalar_lea.sflag [#allocation10], 1
    %14 = vsyncpa %s13, 0
    %15 = vsyncpa [#allocation8], 0
    %s16 = scalar_lea.sflag [#allocation8], 1
    %17 = vsyncpa %s16, 0
    loop: start=0, step=1, limit=4
    $region2: #{tpu_custom_call.1} parent=1 // loop_pre_header
      _
    $region3: #{tpu_custom_call.1} parent=1 // loop_header
      %s19 = sphi 0, %s23
      %p20 = scmp.ge.s32.totalorder %s19, 4
      %s29 = sphi 0, %s31
      %s32 = sphi 0, %s29
      %s33 = sphi 0, %s32
      %s49 = sphi 0, %s33
      %s55 = sphi 0, %s57
      %s58 = sphi 0, %s55
      %s59 = sphi 0, %s58
      %s75 = sphi 0, %s59
      %s79 = sphi 0, %s79
      %s81 = sphi 0, %s79
      %s82 = sphi 0, %s81
      %s96 = sphi 0, %s82
      %s100 = sphi 0, %s100
      %s102 = sphi 0, %s100
      %s103 = sphi 0, %s102
      %s117 = sphi 0, %s103
      %s123 = sphi 0, %s125
      %s126 = sphi 0, %s123
      %s127 = sphi 0, %s126
      %s143 = sphi 0, %s127
    $region4: #{tpu_custom_call.1} parent=1 // loop_header_branch
      %22 = sbr.rel (%p20) target = $region8
    $region5: #{tpu_custom_call.1} parent=1 // loop_body
      %s24 = ssub.s32 %s19, 1
      %s25 = ssub.s32 %s19, 2
      %s26 = sadd.s32 %s19, 1
      %s27 = ssub.s32 %s19, %s26
      %p28 = scmp.eq.s32.totalorder %s27, 0
      %s30 = sadd.s32 %s29, 1
      %s31 = scalar_select %p28, %s29, %s30
      %p34 = pneg %p28
      %p35 = scmp.eq.s32.totalorder %s19, 1
      %p36 = por %p34, %p35
      %p37 = scmp.ne.s32.totalorder %s29, %s32
      %p38 = scmp.eq.s32.totalorder %s19, 0
      %p39 = por %p37, %p38
      %p40 = scmp.ne.s32.totalorder %s29, %s32
      %p41 = scmp.eq.s32.totalorder %s24, 1
      %p42 = por %p40, %p41
      %p43 = scmp.ne.s32.totalorder %s32, %s33
      %p44 = scmp.eq.s32.totalorder %s24, 0
      %p45 = por %p43, %p44
      %p46 = scmp.ne.s32.totalorder %s32, %s33
      %p47 = scmp.eq.s32.totalorder %s25, 1
      %p48 = por %p46, %p47
      %p50 = scmp.ne.s32.totalorder %s33, %s49
      %p51 = scmp.eq.s32.totalorder %s25, 0
      %p52 = por %p50, %p51
      %s53 = ssub.s32 %s19, %s26
      %p54 = scmp.eq.s32.totalorder %s53, 0
      %s56 = sadd.s32 %s55, 1
      %s57 = scalar_select %p54, %s55, %s56
      %p60 = pneg %p54
      %p61 = scmp.eq.s32.totalorder %s19, 1
      %p62 = por %p60, %p61
      %p63 = scmp.ne.s32.totalorder %s55, %s58
      %p64 = scmp.eq.s32.totalorder %s19, 0
      %p65 = por %p63, %p64
      %p66 = scmp.ne.s32.totalorder %s55, %s58
      %p67 = scmp.eq.s32.totalorder %s24, 1
      %p68 = por %p66, %p67
      %p69 = scmp.ne.s32.totalorder %s58, %s59
      %p70 = scmp.eq.s32.totalorder %s24, 0
      %p71 = por %p69, %p70
      %p72 = scmp.ne.s32.totalorder %s58, %s59
      %p73 = scmp.eq.s32.totalorder %s25, 1
      %p74 = por %p72, %p73
      %p76 = scmp.ne.s32.totalorder %s59, %s75
      %p77 = scmp.eq.s32.totalorder %s25, 0
      %p78 = por %p76, %p77
      %s80 = sadd.s32 %s79, 1
      %p83 = scmp.eq.s32.totalorder %s19, 1
      %p84 = scmp.ne.s32.totalorder %s79, %s81
      %p85 = scmp.eq.s32.totalorder %s19, 0
      %p86 = por %p84, %p85
      %p87 = scmp.ne.s32.totalorder %s79, %s81
      %p88 = scmp.eq.s32.totalorder %s24, 1
      %p89 = por %p87, %p88
      %p90 = scmp.ne.s32.totalorder %s81, %s82
      %p91 = scmp.eq.s32.totalorder %s24, 0
      %p92 = por %p90, %p91
      %p93 = scmp.ne.s32.totalorder %s81, %s82
      %p94 = scmp.eq.s32.totalorder %s25, 1
      %p95 = por %p93, %p94
      %p97 = scmp.ne.s32.totalorder %s82, %s96
      %p98 = scmp.eq.s32.totalorder %s25, 0
      %p99 = por %p97, %p98
      %s101 = sadd.s32 %s100, 1
      %p104 = scmp.eq.s32.totalorder %s19, 1
      %p105 = scmp.ne.s32.totalorder %s100, %s102
      %p106 = scmp.eq.s32.totalorder %s19, 0
      %p107 = por %p105, %p106
      %p108 = scmp.ne.s32.totalorder %s100, %s102
      %p109 = scmp.eq.s32.totalorder %s24, 1
      %p110 = por %p108, %p109
      %p111 = scmp.ne.s32.totalorder %s102, %s103
      %p112 = scmp.eq.s32.totalorder %s24, 0
      %p113 = por %p111, %p112
      %p114 = scmp.ne.s32.totalorder %s102, %s103
      %p115 = scmp.eq.s32.totalorder %s25, 1
      %p116 = por %p114, %p115
      %p118 = scmp.ne.s32.totalorder %s103, %s117
      %p119 = scmp.eq.s32.totalorder %s25, 0
      %p120 = por %p118, %p119
      %s121 = ssub.s32 %s19, %s26
      %p122 = scmp.eq.s32.totalorder %s121, 0
      %s124 = sadd.s32 %s123, 1
      %s125 = scalar_select %p122, %s123, %s124
      %p128 = pneg %p122
      %p129 = scmp.eq.s32.totalorder %s19, 1
      %p130 = por %p128, %p129
      %p131 = scmp.ne.s32.totalorder %s123, %s126
      %p132 = scmp.eq.s32.totalorder %s19, 0
      %p133 = por %p131, %p132
      %p134 = scmp.ne.s32.totalorder %s123, %s126
      %p135 = scmp.eq.s32.totalorder %s24, 1
      %p136 = por %p134, %p135
      %p137 = scmp.ne.s32.totalorder %s126, %s127
      %p138 = scmp.eq.s32.totalorder %s24, 0
      %p139 = por %p137, %p138
      %p140 = scmp.ne.s32.totalorder %s126, %s127
      %p141 = scmp.eq.s32.totalorder %s25, 1
      %p142 = por %p140, %p141
      %p144 = scmp.ne.s32.totalorder %s127, %s143
      %p145 = scmp.eq.s32.totalorder %s25, 0
      %p146 = por %p144, %p145
      %p147 = scmp.le.s32.totalorder 1, %s19
      %p148 = scmp.lt.s32.totalorder %s19, 3
      %p149 = pnand %p147, %p148
      %p150 = pneg %p149
      // Predicated region
      $region9: #{tpu_custom_call.1} parent=5 // pred_check
        _
      $region10: #{tpu_custom_call.1} parent=5 // pred_check_branch
        %152 = sbr.rel (%p149) target = $region12
      $region11: #{tpu_custom_call.1} parent=5 // pred_region
        %s153 = ssub.s32 %s19, 1
        // Predicated region
        $region13: #{tpu_custom_call.1} parent=11 // pred_check
          %p154 = pneg %p92
        $region14: #{tpu_custom_call.1} parent=11 // pred_check_branch
          %156 = sbr.rel (%p154) target = $region16
        $region15: #{tpu_custom_call.1} parent=11 // pred_region
          %158 = vsyncadd [#allocation10], 0
          %s159 = sshll.u32 %s2, 4
          %s160 = int_to_ptr.hbm [resolvable:$true] %s159
          %s161 = sshll.u32 [#allocation11], 4
          %s162 = int_to_ptr.vmem [resolvable:$true] %s161
          %167 = dma.hbm_to_vmem [thread:$0]  %s160, 256, %s162, [#allocation10], 64, 64, 4
        $region16: #{tpu_custom_call.1} parent=11 // pred_fallthru
          _
        // Predicated region
        $region17: #{tpu_custom_call.1} parent=11 // pred_check
          %p168 = pneg %p113
        $region18: #{tpu_custom_call.1} parent=11 // pred_check_branch
          %170 = sbr.rel (%p168) target = $region20
        $region19: #{tpu_custom_call.1} parent=11 // pred_region
          _
        $region20: #{tpu_custom_call.1} parent=11 // pred_fallthru
          _
      $region12: #{tpu_custom_call.1} parent=5 // pred_fallthru
        _
      %p171 = scmp.lt.s32.totalorder %s19, 2
      // Predicated region
      $region21: #{tpu_custom_call.1} parent=5 // pred_check
        %p172 = pneg %p171
      $region22: #{tpu_custom_call.1} parent=5 // pred_check_branch
        %174 = sbr.rel (%p172) target = $region24
      $region23: #{tpu_custom_call.1} parent=5 // pred_region
        // Predicated region
        $region25: #{tpu_custom_call.1} parent=23 // pred_check
          %p175 = pneg %p39
        $region26: #{tpu_custom_call.1} parent=23 // pred_check_branch
          %177 = sbr.rel (%p175) target = $region28
        $region27: #{tpu_custom_call.1} parent=23 // pred_region
          %s178 = sand.u32 %s29, 1
          %s179 = scalar_lea.sflag [#allocation7], %s178
          %s180 = sand.u32 %s29, 1
          %s181 = smul.addr %s180, 4
          %s182 = scalar_lea.vmem [#allocation6], %s181
          %184 = vsyncadd %s179, 0
          %s185 = smul.addr %s19, 4
          %s186 = scalar_lea.hbm %s0, %s185
          %s188 = sshll.u32 %s186, 4
          %s189 = int_to_ptr.hbm [resolvable:$true] %s188
          %s190 = sshll.u32 %s182, 4
          %s191 = int_to_ptr.vmem [resolvable:$true] %s190
          %193 = dma.hbm_to_vmem [thread:$0]  %s189, 64, %s191, %s179
        $region28: #{tpu_custom_call.1} parent=23 // pred_fallthru
          _
        // Predicated region
        $region29: #{tpu_custom_call.1} parent=23 // pred_check
          %p194 = pneg %p65
        $region30: #{tpu_custom_call.1} parent=23 // pred_check_branch
          %196 = sbr.rel (%p194) target = $region32
        $region31: #{tpu_custom_call.1} parent=23 // pred_region
          %s197 = sand.u32 %s19, 1
          %s198 = scalar_lea.sflag [#allocation10], %s197
          %s199 = sand.u32 %s55, 1
          %s200 = scalar_lea.vmem [#allocation9], %s199
          %202 = vsyncadd %s198, 0
          %s203 = scalar_lea.hbm %s1, %s19
          %s205 = sshll.u32 %s203, 4
          %s206 = int_to_ptr.hbm [resolvable:$true] %s205
          %s207 = sshll.u32 %s200, 4
          %s208 = int_to_ptr.vmem [resolvable:$true] %s207
          %210 = dma.hbm_to_vmem [thread:$0]  %s206, 16, %s208, %s198
        $region32: #{tpu_custom_call.1} parent=23 // pred_fallthru
          _
      $region24: #{tpu_custom_call.1} parent=5 // pred_fallthru
        _
      %p211 = scmp.le.s32.totalorder 1, %s19
      %p212 = scmp.lt.s32.totalorder %s19, 3
      %p213 = pnand %p211, %p212
      %p214 = pneg %p213
      // Predicated region
      $region33: #{tpu_custom_call.1} parent=5 // pred_check
        _
      $region34: #{tpu_custom_call.1} parent=5 // pred_check_branch
        %216 = sbr.rel (%p213) target = $region36
      $region35: #{tpu_custom_call.1} parent=5 // pred_region
        %s217 = ssub.s32 %s19, 1
        %s218 = sand.u32 %s32, 1
        %s219 = scalar_lea.sflag [#allocation7], %s218
        %s220 = sand.u32 %s32, 1
        %s221 = smul.addr %s220, 4
        %s222 = scalar_lea.vmem [#allocation6], %s221
        // Predicated region
        $region37: #{tpu_custom_call.1} parent=35 // pred_check
          %p223 = pneg %p45
        $region38: #{tpu_custom_call.1} parent=35 // pred_check_branch
          %225 = sbr.rel (%p223) target = $region40
        $region39: #{tpu_custom_call.1} parent=35 // pred_region
          %227 = dma.done %s219, 64
        $region40: #{tpu_custom_call.1} parent=35 // pred_fallthru
          _
        %s228 = sand.u32 %s24, 1
        %s229 = scalar_lea.sflag [#allocation10], %s228
        %s230 = sand.u32 %s58, 1
        %s231 = scalar_lea.vmem [#allocation9], %s230
        // Predicated region
        $region41: #{tpu_custom_call.1} parent=35 // pred_check
          %p232 = pneg %p71
        $region42: #{tpu_custom_call.1} parent=35 // pred_check_branch
          %234 = sbr.rel (%p232) target = $region44
        $region43: #{tpu_custom_call.1} parent=35 // pred_region
          %236 = dma.done %s229, 16
        $region44: #{tpu_custom_call.1} parent=35 // pred_fallthru
          _
        // Predicated region
        $region45: #{tpu_custom_call.1} parent=35 // pred_check
          %p237 = pneg %p92
        $region46: #{tpu_custom_call.1} parent=35 // pred_check_branch
          %239 = sbr.rel (%p237) target = $region48
        $region47: #{tpu_custom_call.1} parent=35 // pred_region
          %241 = dma.done [#allocation10], 256
        $region48: #{tpu_custom_call.1} parent=35 // pred_fallthru
          _
        %s242 = sand.u32 %s32, 1
        %s243 = scalar_lea.sflag [#allocation7], %s242
        %s244 = sand.u32 %s32, 1
        %s245 = smul.addr %s244, 4
        %s246 = scalar_lea.vmem [#allocation6], %s245
        %p247 = pneg %p45
        %p248 = pneg %p42
        %s249 = sand.u32 %s24, 1
        %s250 = scalar_lea.sflag [#allocation10], %s249
        %s251 = sand.u32 %s58, 1
        %s252 = scalar_lea.vmem [#allocation9], %s251
        %p253 = pneg %p71
        %p254 = pneg %p68
        %p255 = pneg %p92
        %p256 = pneg %p89
        %p257 = pneg %p113
        %p258 = pneg %p110
        %p259 = pneg %p139
        %p260 = pneg %p136
        %s261 = sand.u32 %s126, 1
        %s262 = scalar_lea.sflag [#allocation8], %s261
        %s263 = sand.u32 %s126, 1
        %s264 = smul.addr %s263, 8
        %s265 = scalar_lea.vmem [#allocation12], %s264
        %v267 = vld [vmem:[%s222] sm:$0xf]
        %v268 = vld [vmem:[#allocation11] sm:$0xf]
        %v269 = vld [vmem:[#allocation11 + $0x4] sm:$0xf]
        %v270 = vld [vmem:[#allocation11 + $0x8] sm:$0xf]
        %v271 = vld [vmem:[#allocation11 + $0xc] sm:$0xf]
        %v272 = vld [vmem:[%s3] sm:$0x1]
        %v274 = vperm.slane %v272, 0
        %v280 = vunpack.c.l.b16 %v268
        %v281 = vunpack.c.l.b16 %v269
        %v282 = vunpack.c.l.b16 %v270
        %v283 = vunpack.c.l.b16 %v271
        %v284 = vpack.c.b16 %v281, %v280
        %v285 = vpack.c.b16 %v283, %v282
        %vm288 = vcmask 261120
        %v290 = vsel %vm288, %v267, 0
        %292 = vmatpush.bf16.msra.mxu0 0
        %293 = vmatpush.bf16.msra.mxu0 0
        %294 = vmatpush.bf16.msra.mxu0 0
        %295 = vmatpush.bf16.msra.mxu0 0
        %296 = vmatpush.bf16.msra.mxu0 0
        %297 = vmatpush.bf16.msra.mxu0 0
        %298 = vmatpush.bf16.msra.mxu0 %v285
        %299 = vmatpush.bf16.msra.mxu0 %v284
        %300 = vmatmul.bf16.gmra.mxu0 %v290
        %v301 = vpop.f32.mrf.mxu0
        %v302 = vadd.f32 %v274, %v301
        %v303 = vpop.f32.mrf.mxu0
        %304 = vdwg.mxu0
        %v305 = vpack.c.bf16 %v302, %v302
        %vm306 = vcmask 257024
        %307 = vst.msk [vmem:[#allocation2] sm:$0xf] %vm306, %v305
        %309 = vrot.lane.b32.xlu0 %v305, 96
        %v310 = vpop.permute.xlu0 %309
        %312 = vst.msk [vmem:[#allocation3] sm:$0xf] %vm306, %v310
        %313 = vrot.lane.b32.xlu0 %v305, 64
        %v314 = vpop.permute.xlu0 %313
        %316 = vst.msk [vmem:[#allocation4] sm:$0xf] %vm306, %v314
        %v317 = vld [vmem:[%s231] sm:$0x1]
        %v318 = vld [vmem:[#allocation2] sm:$0xf]
        %v319 = vld [vmem:[#allocation3] sm:$0xf]
        %v320 = vld [vmem:[#allocation4] sm:$0xf]
        %v322 = vperm.slane %v317, 0
        %vm324 = vcmask 64512
        %v326 = vsel %vm324, %v318, 0
        %v329 = vsel %vm324, %v319, 0
        %331 = vmatpush.bf16.xpose.msra.mxu0 0
        %332 = vmatpush.bf16.xpose.msra.mxu0 0
        %333 = vmatpush.bf16.xpose.msra.mxu0 0
        %334 = vmatpush.bf16.xpose.msra.mxu0 0
        %335 = vmatpush.bf16.xpose.msra.mxu0 0
        %336 = vmatpush.bf16.xpose.msra.mxu0 0
        %337 = vmatpush.bf16.xpose.msra.mxu0 0
        %338 = vmatpush.bf16.xpose.msra.mxu0 %v329
        %339 = vmatmul.bf16.gmra.mxu0 %v326
        %v340 = vpop.f32.mrf.mxu0
        %v341 = vadd.f32 %v322, %v340
        %v342 = vpop.f32.mrf.mxu0
        %343 = vdwg.mxu0
        %v344 = vsel %vm324, %v341, -inf
        %345 = vmax.xlane.f32.xlu0 %v344
        %v346 = vpop.xlane.xlu0 %345
        %v347 = vsub.f32 %v341, %v346
        %v348 = vmul.f32 %v347, 1.442695
        %v349 = vpow.pop %v348
        %v350 = vsel %vm324, %v349, 0.0
        %351 = vadd.xlane.f32.xlu0 %v350
        %v352 = vpop.xlane.xlu0 %351
        %v353 = vpack.c.bf16 %v349, %v349
        %v355 = vsel %vm324, %v353, 0
        %vm357 = vcmask 1043456
        %v359 = vsel %vm357, %v320, 0
        %361 = vmatpush.bf16.msra.mxu0 0
        %362 = vmatpush.bf16.msra.mxu0 0
        %363 = vmatpush.bf16.msra.mxu0 0
        %364 = vmatpush.bf16.msra.mxu0 0
        %365 = vmatpush.bf16.msra.mxu0 0
        %366 = vmatpush.bf16.msra.mxu0 0
        %367 = vmatpush.bf16.msra.mxu0 0
        %368 = vmatpush.bf16.msra.mxu0 %v359
        %369 = vmatmul.bf16.gmra.mxu0 %v355
        %v370 = vpop.f32.mrf.mxu0
        %v371 = vadd.f32 0.0, %v370
        %v372 = vpop.f32.mrf.mxu0
        %373 = vdwg.mxu0
        %v374 = vrcp.pop %v352
        %v375 = vmul.f32 %v371, %v374
        %v377 = vunpack.c.l.b16 %v318
        %v378 = vpack.c.b16 %v377, %v377
        %379 = vrot.lane.b32.xlu0 %v378, 120
        %v380 = vpop.permute.xlu0 %379
        %v382 = vunpack.c.l.b16 %v319
        %v383 = vpack.c.b16 %v382, %v382
        %384 = vrot.lane.b32.xlu0 %v383, 120
        %v385 = vpop.permute.xlu0 %384
        %v387 = vsel %vm324, %v380, 0
        %v390 = vsel %vm324, %v385, 0
        %392 = vmatpush.bf16.xpose.msra.mxu0 0
        %393 = vmatpush.bf16.xpose.msra.mxu0 0
        %394 = vmatpush.bf16.xpose.msra.mxu0 0
        %395 = vmatpush.bf16.xpose.msra.mxu0 0
        %396 = vmatpush.bf16.xpose.msra.mxu0 0
        %397 = vmatpush.bf16.xpose.msra.mxu0 0
        %398 = vmatpush.bf16.xpose.msra.mxu0 0
        %399 = vmatpush.bf16.xpose.msra.mxu0 %v390
        %400 = vmatmul.bf16.gmra.mxu0 %v387
        %v401 = vpop.f32.mrf.mxu0
        %v402 = vadd.f32 %v322, %v401
        %v403 = vpop.f32.mrf.mxu0
        %404 = vdwg.mxu0
        %v405 = vsel %vm324, %v402, -inf
        %406 = vmax.xlane.f32.xlu0 %v405
        %v407 = vpop.xlane.xlu0 %406
        %v408 = vsub.f32 %v402, %v407
        %v409 = vmul.f32 %v408, 1.442695
        %v410 = vpow.pop %v409
        %v411 = vsel %vm324, %v410, 0.0
        %412 = vadd.xlane.f32.xlu0 %v411
        %v413 = vpop.xlane.xlu0 %412
        %v414 = vpack.c.bf16 %v410, %v410
        %v416 = vunpack.c.l.b16 %v320
        %v417 = vpack.c.b16 %v416, %v416
        %418 = vrot.lane.b32.xlu0 %v417, 120
        %v419 = vpop.permute.xlu0 %418
        %v421 = vsel %vm324, %v414, 0
        %v424 = vsel %vm357, %v419, 0
        %426 = vmatpush.bf16.msra.mxu0 0
        %427 = vmatpush.bf16.msra.mxu0 0
        %428 = vmatpush.bf16.msra.mxu0 0
        %429 = vmatpush.bf16.msra.mxu0 0
        %430 = vmatpush.bf16.msra.mxu0 0
        %431 = vmatpush.bf16.msra.mxu0 0
        %432 = vmatpush.bf16.msra.mxu0 0
        %433 = vmatpush.bf16.msra.mxu0 %v424
        %434 = vmatmul.bf16.gmra.mxu0 %v421
        %v435 = vpop.f32.mrf.mxu0
        %v436 = vadd.f32 0.0, %v435
        %v437 = vpop.f32.mrf.mxu0
        %438 = vdwg.mxu0
        %v439 = vrcp.pop %v413
        %v440 = vmul.f32 %v436, %v439
        %441 = vrot.lane.b32.xlu0 %v378, 112
        %v442 = vpop.permute.xlu0 %441
        %443 = vrot.lane.b32.xlu0 %v383, 112
        %v444 = vpop.permute.xlu0 %443
        %v446 = vsel %vm324, %v442, 0
        %v449 = vsel %vm324, %v444, 0
        %451 = vmatpush.bf16.xpose.msra.mxu0 0
        %452 = vmatpush.bf16.xpose.msra.mxu0 0
        %453 = vmatpush.bf16.xpose.msra.mxu0 0
        %454 = vmatpush.bf16.xpose.msra.mxu0 0
        %455 = vmatpush.bf16.xpose.msra.mxu0 0
        %456 = vmatpush.bf16.xpose.msra.mxu0 0
        %457 = vmatpush.bf16.xpose.msra.mxu0 0
        %458 = vmatpush.bf16.xpose.msra.mxu0 %v449
        %459 = vmatmul.bf16.gmra.mxu0 %v446
        %v460 = vpop.f32.mrf.mxu0
        %v461 = vadd.f32 %v322, %v460
        %v462 = vpop.f32.mrf.mxu0
        %463 = vdwg.mxu0
        %v464 = vsel %vm324, %v461, -inf
        %465 = vmax.xlane.f32.xlu0 %v464
        %v466 = vpop.xlane.xlu0 %465
        %v467 = vsub.f32 %v461, %v466
        %v468 = vmul.f32 %v467, 1.442695
        %v469 = vpow.pop %v468
        %v470 = vsel %vm324, %v469, 0.0
        %471 = vadd.xlane.f32.xlu0 %v470
        %v472 = vpop.xlane.xlu0 %471
        %v473 = vpack.c.bf16 %v469, %v469
        %474 = vrot.lane.b32.xlu0 %v417, 112
        %v475 = vpop.permute.xlu0 %474
        %v477 = vsel %vm324, %v473, 0
        %v480 = vsel %vm357, %v475, 0
        %482 = vmatpush.bf16.msra.mxu0 0
        %483 = vmatpush.bf16.msra.mxu0 0
        %484 = vmatpush.bf16.msra.mxu0 0
        %485 = vmatpush.bf16.msra.mxu0 0
        %486 = vmatpush.bf16.msra.mxu0 0
        %487 = vmatpush.bf16.msra.mxu0 0
        %488 = vmatpush.bf16.msra.mxu0 0
        %489 = vmatpush.bf16.msra.mxu0 %v480
        %490 = vmatmul.bf16.gmra.mxu0 %v477
        %v491 = vpop.f32.mrf.mxu0
        %v492 = vadd.f32 0.0, %v491
        %v493 = vpop.f32.mrf.mxu0
        %494 = vdwg.mxu0
        %v495 = vrcp.pop %v472
        %v496 = vmul.f32 %v492, %v495
        %497 = vrot.lane.b32.xlu0 %v378, 104
        %v498 = vpop.permute.xlu0 %497
        %499 = vrot.lane.b32.xlu0 %v383, 104
        %v500 = vpop.permute.xlu0 %499
        %v502 = vsel %vm324, %v498, 0
        %v505 = vsel %vm324, %v500, 0
        %507 = vmatpush.bf16.xpose.msra.mxu0 0
        %508 = vmatpush.bf16.xpose.msra.mxu0 0
        %509 = vmatpush.bf16.xpose.msra.mxu0 0
        %510 = vmatpush.bf16.xpose.msra.mxu0 0
        %511 = vmatpush.bf16.xpose.msra.mxu0 0
        %512 = vmatpush.bf16.xpose.msra.mxu0 0
        %513 = vmatpush.bf16.xpose.msra.mxu0 0
        %514 = vmatpush.bf16.xpose.msra.mxu0 %v505
        %515 = vmatmul.bf16.gmra.mxu0 %v502
        %v516 = vpop.f32.mrf.mxu0
        %v517 = vadd.f32 %v322, %v516
        %v518 = vpop.f32.mrf.mxu0
        %519 = vdwg.mxu0
        %v520 = vsel %vm324, %v517, -inf
        %521 = vmax.xlane.f32.xlu0 %v520
        %v522 = vpop.xlane.xlu0 %521
        %v523 = vsub.f32 %v517, %v522
        %v524 = vmul.f32 %v523, 1.442695
        %v525 = vpow.pop %v524
        %v526 = vsel %vm324, %v525, 0.0
        %527 = vadd.xlane.f32.xlu0 %v526
        %v528 = vpop.xlane.xlu0 %527
        %v529 = vpack.c.bf16 %v525, %v525
        %530 = vrot.lane.b32.xlu0 %v417, 104
        %v531 = vpop.permute.xlu0 %530
        %v533 = vsel %vm324, %v529, 0
        %v536 = vsel %vm357, %v531, 0
        %538 = vmatpush.bf16.msra.mxu0 0
        %539 = vmatpush.bf16.msra.mxu0 0
        %540 = vmatpush.bf16.msra.mxu0 0
        %541 = vmatpush.bf16.msra.mxu0 0
        %542 = vmatpush.bf16.msra.mxu0 0
        %543 = vmatpush.bf16.msra.mxu0 0
        %544 = vmatpush.bf16.msra.mxu0 0
        %545 = vmatpush.bf16.msra.mxu0 %v536
        %546 = vmatmul.bf16.gmra.mxu0 %v533
        %v547 = vpop.f32.mrf.mxu0
        %v548 = vadd.f32 0.0, %v547
        %v549 = vpop.f32.mrf.mxu0
        %550 = vdwg.mxu0
        %v551 = vrcp.pop %v528
        %v552 = vmul.f32 %v548, %v551
        %554 = vrot.lane.b32.xlu0 %v440, 8
        %v555 = vpop.permute.xlu0 %554
        %558 = vrot.lane.b32.xlu0 %v496, 16
        %v559 = vpop.permute.xlu0 %558
        %562 = vrot.lane.b32.xlu0 %v552, 24
        %v563 = vpop.permute.xlu0 %562
        %v565 = vsel %vm324, %v375, %v555
        %vm566 = vcmask 130048
        %v567 = vsel %vm566, %v565, %v559
        %vm568 = vcmask 195584
        %v569 = vsel %vm568, %v567, %v563
        %570 = vst.msk [vmem:[#allocation5] sm:$0xff] %vm288, %v569
        %v571 = vld [vmem:[#allocation5] sm:$0xff]
        %572 = vst.msk [vmem:[%s265] sm:$0xff] %vm288, %v571
        %s573 = sand.u32 %s126, 1
        %s574 = scalar_lea.sflag [#allocation8], %s573
        %s575 = sand.u32 %s126, 1
        %s576 = smul.addr %s575, 8
        %s577 = scalar_lea.vmem [#allocation12], %s576
        // Predicated region
        $region49: #{tpu_custom_call.1} parent=35 // pred_check
          %p578 = pneg %p136
        $region50: #{tpu_custom_call.1} parent=35 // pred_check_branch
          %580 = sbr.rel (%p578) target = $region52
        $region51: #{tpu_custom_call.1} parent=35 // pred_region
          %582 = vsyncadd %s574, 0
          %s583 = smul.addr %s24, 8
          %s584 = scalar_lea.hbm %s4, %s583
          %s586 = sshll.u32 %s577, 4
          %s587 = int_to_ptr.vmem [resolvable:$true] %s586
          %s588 = sshll.u32 %s584, 4
          %s589 = int_to_ptr.hbm [resolvable:$true] %s588
          %591 = dma.vmem_to_hbm [thread:$0]  %s587, 128, %s589, %s574
        $region52: #{tpu_custom_call.1} parent=35 // pred_fallthru
          _
      $region36: #{tpu_custom_call.1} parent=5 // pred_fallthru
        _
      %p592 = scmp.le.s32.totalorder 2, %s19
      // Predicated region
      $region53: #{tpu_custom_call.1} parent=5 // pred_check
        %p593 = pneg %p592
      $region54: #{tpu_custom_call.1} parent=5 // pred_check_branch
        %595 = sbr.rel (%p593) target = $region56
      $region55: #{tpu_custom_call.1} parent=5 // pred_region
        %s596 = ssub.s32 %s19, 2
        // Predicated region
        $region57: #{tpu_custom_call.1} parent=55 // pred_check
          %p597 = pneg %p142
        $region58: #{tpu_custom_call.1} parent=55 // pred_check_branch
          %599 = sbr.rel (%p597) target = $region60
        $region59: #{tpu_custom_call.1} parent=55 // pred_region
          %s600 = sand.u32 %s127, 1
          %s601 = scalar_lea.sflag [#allocation8], %s600
          %s602 = sand.u32 %s127, 1
          %s603 = smul.addr %s602, 8
          %s604 = scalar_lea.vmem [#allocation12], %s603
          %606 = dma.done %s601, 128
        $region60: #{tpu_custom_call.1} parent=55 // pred_fallthru
          _
      $region56: #{tpu_custom_call.1} parent=5 // pred_fallthru
        _
    $region6: #{tpu_custom_call.1} parent=1 // loop_footer
      %s23 = sadd.s32 1, %s19
    $region7: #{tpu_custom_call.1} parent=1 // loop_footer_branch
      %18 = sbr.rel target = $region3
    $region8: #{tpu_custom_call.1} parent=1 // loop_exit
      _
    %607 = vsyncpa [#allocation7], 1
    %s608 = scalar_lea.sflag [#allocation7], 1
    %609 = vsyncpa %s608, 1
    %610 = vsyncpa [#allocation10], 1
    %s611 = scalar_lea.sflag [#allocation10], 1
    %612 = vsyncpa %s611, 1
    %613 = vsyncpa [#allocation8], 1
    %s614 = scalar_lea.sflag [#allocation8], 1
    %615 = vsyncpa %s614, 1

</llo_original>
